<compile_context>
chip_gen: v7x
topology: tpu7x:2x2x1
jax: 0.10.0
libtpu: 0.0.40
codegen_flags: <defaults>
</compile_context>

<pallas_src>
import jax
import jax.numpy as jnp
from jax.experimental import pallas as pl
from jax.experimental.pallas import tpu as pltpu


def _round_up(x, m):
    return (x + m - 1) // m * m


def _pick_tile(n, candidates):
    for t in candidates:
        if n % t == 0:
            return t
    return 128


def _gate_graph_conv_kernel(feat_m_ref, feat_k_ref, a_ref,
                            w1_ref, w2_ref, b_ref,
                            gwu_ref, gwx_ref, gb_ref,
                            out_ref, acc_ref):
    k = pl.program_id(2)

    @pl.when(k == 0)
    def _():
        acc_ref[...] = jnp.zeros_like(acc_ref)

    # agg[row tile] += A[row tile, k tile] @ features[k tile]
    # bf16 operands streamed from HBM, f32 accumulation on the MXU.
    acc_ref[...] += jnp.dot(a_ref[...], feat_k_ref[...],
                            preferred_element_type=jnp.float32)

    @pl.when(k == pl.num_programs(2) - 1)
    def _():
        feat = feat_m_ref[...]          # (TM, Dp) f32
        agg = acc_ref[...]              # (TM, Dp) f32

        # u = cat([feat, agg], -1) @ W + b  ==  feat @ W1 + agg @ W2 + b
        u = (jnp.dot(feat, w1_ref[...], preferred_element_type=jnp.float32)
             + jnp.dot(agg, w2_ref[...], preferred_element_type=jnp.float32)
             + b_ref[...])

        # gate = sigmoid(Linear(cat([u, feat], -1)))
        gate_lin = (jnp.dot(u, gwu_ref[...], preferred_element_type=jnp.float32)
                    + jnp.dot(feat, gwx_ref[...], preferred_element_type=jnp.float32)
                    + gb_ref[...])
        gate = jax.nn.sigmoid(gate_lin)

        out = gate * jnp.tanh(u) + (1.0 - gate) * feat
        out_ref[...] = jnp.maximum(out, 0.0)


def gate_graph_conv(features, A, weight, bias, gate_w, gate_b):
    """features: (B, N, D) f32; A: (B, N, N) f32.
    weight: (2D, F); bias: (F,); gate_w: (D+F, F); gate_b: (F,).  Requires F == D."""
    B, N, D = features.shape
    F = weight.shape[1]
    assert F == D, "broadcast in the gated update requires out_dim == in_dim"

    # ---- TPU-friendly padding / tiling --------------------------------------
    Dp = _round_up(D, 128)            # lane-dense feature / output axis
    Np = _round_up(N, 128)            # node axis, multiple of (8,128) tiles
    TM = _pick_tile(Np, (256, 128))   # row tile of A / features / output
    TK = _pick_tile(Np, (512, 256, 128))  # reduction tile of A

    pad_n = Np - N
    pad_d = Dp - D

    feat_f32 = jnp.pad(features.astype(jnp.float32),
                       ((0, 0), (0, pad_n), (0, pad_d)))
    a_f32 = jnp.pad(A.astype(jnp.float32),
                    ((0, 0), (0, pad_n), (0, pad_n)))

    # bf16 copies for the HBM-bound streaming matmul (f32 accumulation in-kernel).
    feat_bf16 = feat_f32.astype(jnp.bfloat16)
    a_bf16 = a_f32.astype(jnp.bfloat16)

    # Split the concatenated weights; zero-pad so padded rows/cols contribute 0.
    w1 = jnp.pad(weight[:D, :].astype(jnp.float32), ((0, pad_d), (0, pad_d)))
    w2 = jnp.pad(weight[D:, :].astype(jnp.float32), ((0, pad_d), (0, pad_d)))
    bias2d = jnp.pad(bias.astype(jnp.float32), (0, pad_d)).reshape(1, Dp)
    gwu = jnp.pad(gate_w[:F, :].astype(jnp.float32), ((0, pad_d), (0, pad_d)))
    gwx = jnp.pad(gate_w[F:, :].astype(jnp.float32), ((0, pad_d), (0, pad_d)))
    gbias2d = jnp.pad(gate_b.astype(jnp.float32), (0, pad_d)).reshape(1, Dp)

    const2d = lambda b, i, k: (0, 0)

    out_padded = pl.pallas_call(
        _gate_graph_conv_kernel,
        out_shape=jax.ShapeDtypeStruct((B, Np, Dp), jnp.float32),
        grid_spec=pltpu.PrefetchScalarGridSpec(
            num_scalar_prefetch=0,
            grid=(B, Np // TM, Np // TK),
            in_specs=[
                # M-side features (row tile), f32 — resident across k.
                pl.BlockSpec((pl.Squeezed(), TM, Dp), lambda b, i, k: (b, i, 0)),
                # K-side features (reduction tile), bf16.
                pl.BlockSpec((pl.Squeezed(), TK, Dp), lambda b, i, k: (b, k, 0)),
                # Adjacency tile, bf16.
                pl.BlockSpec((pl.Squeezed(), TM, TK), lambda b, i, k: (b, i, k)),
                # Weights / biases: constant index map -> stay VMEM-resident.
                pl.BlockSpec((Dp, Dp), const2d),   # W1 (features part)
                pl.BlockSpec((Dp, Dp), const2d),   # W2 (agg part)
                pl.BlockSpec((1, Dp), const2d),    # bias
                pl.BlockSpec((Dp, Dp), const2d),   # gate W (u part)
                pl.BlockSpec((Dp, Dp), const2d),   # gate W (features part)
                pl.BlockSpec((1, Dp), const2d),    # gate bias
            ],
            out_specs=pl.BlockSpec((pl.Squeezed(), TM, Dp),
                                   lambda b, i, k: (b, i, 0)),
            scratch_shapes=[pltpu.VMEM((TM, Dp), jnp.float32)],
        ),
        compiler_params=pltpu.CompilerParams(
            dimension_semantics=("parallel", "parallel", "arbitrary"),
            vmem_limit_bytes=32 * 1024 * 1024,
        ),
    )(feat_f32, feat_bf16, a_bf16, w1, w2, bias2d, gwu, gwx, gbias2d)

    return out_padded[:, :N, :D]


def reference(features, A, weight, bias, gate_w, gate_b, agg_dtype=jnp.bfloat16):
    # Mirrors the kernel: aggregation matmul in bf16 with f32 accumulation,
    # everything else in f32.
    agg = jnp.einsum('bij,bjd->bid', A.astype(agg_dtype), features.astype(agg_dtype),
                     preferred_element_type=jnp.float32)
    cat = jnp.concatenate([features, agg], axis=2)
    u = jnp.einsum('bnd,df->bnf', cat, weight) + bias
    gate = jax.nn.sigmoid(
        jnp.einsum('bnd,df->bnf', jnp.concatenate([u, features], axis=2), gate_w)
        + gate_b)
    out = gate * jnp.tanh(u) + (1.0 - gate) * features
    return jax.nn.relu(out)


if __name__ == "__main__":
    B, N, D = 2, 8, 32
    F = D  # out_dim must equal in_dim (see note above)

    key = jax.random.PRNGKey(0)
    kx, ka, kw, kgw, kgb = jax.random.split(key, 5)

    features = jax.random.normal(kx, (B, N, D), dtype=jnp.float32)
    # adjacency-like row-stochastic matrix
    A = jax.nn.softmax(jax.random.normal(ka, (B, N, N), dtype=jnp.float32), axis=-1)

    # deterministic parameter init (xavier-uniform-ish for weights, zero/uniform bias)
    limit_w = (6.0 / (2 * D + F)) ** 0.5
    weight = jax.random.uniform(kw, (2 * D, F), jnp.float32, -limit_w, limit_w)
    bias = jnp.zeros((F,), jnp.float32)
    limit_g = (1.0 / (D + F)) ** 0.5
    gate_w = jax.random.uniform(kgw, (D + F, F), jnp.float32, -limit_g, limit_g)
    gate_b = jax.random.uniform(kgb, (F,), jnp.float32, -limit_g, limit_g)

    out = gate_graph_conv(features, A, weight, bias, gate_w, gate_b)
    out = jax.block_until_ready(out)

    ref = reference(features, A, weight, bias, gate_w, gate_b)
    assert out.shape == (B, N, D)
    # bf16 streaming of A / K-side features => looser tolerance than pure f32.
    assert jnp.allclose(out, ref, atol=2e-2, rtol=2e-2), "mismatch vs reference"

    print("KERNEL_OK")
</pallas_src>

<mosaic_0001>
module attributes {stable_mosaic.version = 11 : i64} {
  func.func @_gate_graph_conv_kernel(%arg0: i32, %arg1: i32, %arg2: i32, %arg3: memref<1x128x128xf32, #tpu.memory_space<vmem>>, %arg4: memref<1x128x128xbf16, #tpu.memory_space<vmem>>, %arg5: memref<1x128x128xbf16, #tpu.memory_space<vmem>>, %arg6: memref<128x128xf32, #tpu.memory_space<vmem>>, %arg7: memref<128x128xf32, #tpu.memory_space<vmem>>, %arg8: memref<1x128xf32, #tpu.memory_space<vmem>>, %arg9: memref<128x128xf32, #tpu.memory_space<vmem>>, %arg10: memref<128x128xf32, #tpu.memory_space<vmem>>, %arg11: memref<1x128xf32, #tpu.memory_space<vmem>>, %arg12: memref<1x128x128xf32, #tpu.memory_space<vmem>>, %arg13: memref<128x128xf32, #tpu.memory_space<vmem>>) attributes {dimension_semantics = [#tpu.dimension_semantics<parallel>, #tpu.dimension_semantics<parallel>, #tpu.dimension_semantics<arbitrary>], iteration_bounds = array<i64: 2, 1, 1>, scalar_prefetch = 0 : i64, scratch_operands = 1 : i64, tpu.core_type = #tpu.core_type<tc>, window_params = [{transform_indices = @transform_0, window_bounds = array<i64: 1, 128, 128>}, {transform_indices = @transform_1, window_bounds = array<i64: 1, 128, 128>}, {transform_indices = @transform_2, window_bounds = array<i64: 1, 128, 128>}, {pipeline_mode = #tpu.pipeline_mode<synchronous>, transform_indices = @transform_3, window_bounds = array<i64: 128, 128>}, {pipeline_mode = #tpu.pipeline_mode<synchronous>, transform_indices = @transform_4, window_bounds = array<i64: 128, 128>}, {pipeline_mode = #tpu.pipeline_mode<synchronous>, transform_indices = @transform_5, window_bounds = array<i64: 1, 128>}, {pipeline_mode = #tpu.pipeline_mode<synchronous>, transform_indices = @transform_6, window_bounds = array<i64: 128, 128>}, {pipeline_mode = #tpu.pipeline_mode<synchronous>, transform_indices = @transform_7, window_bounds = array<i64: 128, 128>}, {pipeline_mode = #tpu.pipeline_mode<synchronous>, transform_indices = @transform_8, window_bounds = array<i64: 1, 128>}, {transform_indices = @transform_9, window_bounds = array<i64: 1, 128, 128>}]} {
    %c0_i32 = arith.constant 0 : i32
    %0 = arith.cmpi eq, %arg2, %c0_i32 : i32
    %1 = arith.extui %0 : i1 to i32
    %c0_i32_0 = arith.constant 0 : i32
    %2 = arith.cmpi ne, %1, %c0_i32_0 : i32
    scf.if %2 {
      %cst_12 = arith.constant 0.000000e+00 : f32
      %14 = vector.broadcast %cst_12 : f32 to vector<128x128xf32>
      %c0_13 = arith.constant 0 : index
      %c0_14 = arith.constant 0 : index
      %15 = vector.load %arg13[%c0_13, %c0_14] : memref<128x128xf32, #tpu.memory_space<vmem>>, vector<128x128xf32>
      tpu.vector_store %arg13[%c0_13, %c0_14], %14 {strides = array<i32>} : memref<128x128xf32, #tpu.memory_space<vmem>>, vector<128x128xf32>,
    } else {
    }
    %c0 = arith.constant 0 : index
    %c0_1 = arith.constant 0 : index
    %3 = vector.load %arg13[%c0, %c0_1] : memref<128x128xf32, #tpu.memory_space<vmem>>, vector<128x128xf32>
    %c0_2 = arith.constant 0 : index
    %c0_3 = arith.constant 0 : index
    %c0_4 = arith.constant 0 : index
    %4 = vector.load %arg5[%c0_2, %c0_3, %c0_4] : memref<1x128x128xbf16, #tpu.memory_space<vmem>>, vector<1x128x128xbf16>
    %5 = vector.shape_cast %4 : vector<1x128x128xbf16> to vector<128x128xbf16>
    %c0_5 = arith.constant 0 : index
    %c0_6 = arith.constant 0 : index
    %c0_7 = arith.constant 0 : index
    %6 = vector.load %arg4[%c0_5, %c0_6, %c0_7] : memref<1x128x128xbf16, #tpu.memory_space<vmem>>, vector<1x128x128xbf16>
    %7 = vector.shape_cast %6 : vector<1x128x128xbf16> to vector<128x128xbf16>
    %cst = arith.constant dense<0.000000e+00> : vector<128x128xf32>
    %8 = tpu.matmul %5, %7, %cst {dimension_numbers = #tpu.dot_dimension_numbers<[1], [0], [0], [1], [0, 0, 1, 1], [], []>} : vector<128x128xbf16>, vector<128x128xbf16>, vector<128x128xf32> -> vector<128x128xf32>
    %9 = arith.addf %3, %8 : vector<128x128xf32>
    %c0_8 = arith.constant 0 : index
    %c0_9 = arith.constant 0 : index
    %10 = vector.load %arg13[%c0_8, %c0_9] : memref<128x128xf32, #tpu.memory_space<vmem>>, vector<128x128xf32>
    tpu.vector_store %arg13[%c0_8, %c0_9], %9 {strides = array<i32>} : memref<128x128xf32, #tpu.memory_space<vmem>>, vector<128x128xf32>,
    %c0_i32_10 = arith.constant 0 : i32
    %11 = arith.cmpi eq, %arg2, %c0_i32_10 : i32
    %12 = arith.extui %11 : i1 to i32
    %c0_i32_11 = arith.constant 0 : i32
    %13 = arith.cmpi ne, %12, %c0_i32_11 : i32
    scf.if %13 {
      %c0_12 = arith.constant 0 : index
      %c0_13 = arith.constant 0 : index
      %c0_14 = arith.constant 0 : index
      %14 = vector.load %arg3[%c0_12, %c0_13, %c0_14] : memref<1x128x128xf32, #tpu.memory_space<vmem>>, vector<1x128x128xf32>
      %15 = vector.shape_cast %14 : vector<1x128x128xf32> to vector<128x128xf32>
      %c0_15 = arith.constant 0 : index
      %c0_16 = arith.constant 0 : index
      %16 = vector.load %arg13[%c0_15, %c0_16] : memref<128x128xf32, #tpu.memory_space<vmem>>, vector<128x128xf32>
      %c0_17 = arith.constant 0 : index
      %c0_18 = arith.constant 0 : index
      %17 = vector.load %arg6[%c0_17, %c0_18] : memref<128x128xf32, #tpu.memory_space<vmem>>, vector<128x128xf32>
      %cst_19 = arith.constant dense<0.000000e+00> : vector<128x128xf32>
      %18 = tpu.matmul %15, %17, %cst_19 {dimension_numbers = #tpu.dot_dimension_numbers<[1], [0], [0], [1], [0, 0, 1, 1], [], []>} : vector<128x128xf32>, vector<128x128xf32>, vector<128x128xf32> -> vector<128x128xf32>
      %c0_20 = arith.constant 0 : index
      %c0_21 = arith.constant 0 : index
      %19 = vector.load %arg7[%c0_20, %c0_21] : memref<128x128xf32, #tpu.memory_space<vmem>>, vector<128x128xf32>
      %cst_22 = arith.constant dense<0.000000e+00> : vector<128x128xf32>
      %20 = tpu.matmul %16, %19, %cst_22 {dimension_numbers = #tpu.dot_dimension_numbers<[1], [0], [0], [1], [0, 0, 1, 1], [], []>} : vector<128x128xf32>, vector<128x128xf32>, vector<128x128xf32> -> vector<128x128xf32>
      %21 = arith.addf %18, %20 : vector<128x128xf32>
      %c0_23 = arith.constant 0 : index
      %c0_24 = arith.constant 0 : index
      %22 = vector.load %arg8[%c0_23, %c0_24] : memref<1x128xf32, #tpu.memory_space<vmem>>, vector<1x128xf32>
      %23 = vector.broadcast %22 : vector<1x128xf32> to vector<128x128xf32>
      %24 = arith.addf %21, %23 : vector<128x128xf32>
      %c0_25 = arith.constant 0 : index
      %c0_26 = arith.constant 0 : index
      %25 = vector.load %arg9[%c0_25, %c0_26] : memref<128x128xf32, #tpu.memory_space<vmem>>, vector<128x128xf32>
      %cst_27 = arith.constant dense<0.000000e+00> : vector<128x128xf32>
      %26 = tpu.matmul %24, %25, %cst_27 {dimension_numbers = #tpu.dot_dimension_numbers<[1], [0], [0], [1], [0, 0, 1, 1], [], []>} : vector<128x128xf32>, vector<128x128xf32>, vector<128x128xf32> -> vector<128x128xf32>
      %c0_28 = arith.constant 0 : index
      %c0_29 = arith.constant 0 : index
      %27 = vector.load %arg10[%c0_28, %c0_29] : memref<128x128xf32, #tpu.memory_space<vmem>>, vector<128x128xf32>
      %cst_30 = arith.constant dense<0.000000e+00> : vector<128x128xf32>
      %28 = tpu.matmul %15, %27, %cst_30 {dimension_numbers = #tpu.dot_dimension_numbers<[1], [0], [0], [1], [0, 0, 1, 1], [], []>} : vector<128x128xf32>, vector<128x128xf32>, vector<128x128xf32> -> vector<128x128xf32>
      %29 = arith.addf %26, %28 : vector<128x128xf32>
      %c0_31 = arith.constant 0 : index
      %c0_32 = arith.constant 0 : index
      %30 = vector.load %arg11[%c0_31, %c0_32] : memref<1x128xf32, #tpu.memory_space<vmem>>, vector<1x128xf32>
      %31 = vector.broadcast %30 : vector<1x128xf32> to vector<128x128xf32>
      %32 = arith.addf %29, %31 : vector<128x128xf32>
      %33 = arith.negf %32 : vector<128x128xf32>
      %34 = math.exp %33 : vector<128x128xf32>
      %cst_33 = arith.constant 1.000000e+00 : f32
      %35 = vector.broadcast %cst_33 : f32 to vector<128x128xf32>
      %36 = arith.addf %35, %34 : vector<128x128xf32>
      %37 = arith.divf %35, %36 : vector<128x128xf32>
      %38 = math.tanh %24 : vector<128x128xf32>
      %39 = arith.mulf %37, %38 : vector<128x128xf32>
      %cst_34 = arith.constant 1.000000e+00 : f32
      %40 = vector.broadcast %cst_34 : f32 to vector<128x128xf32>
      %41 = arith.subf %40, %37 : vector<128x128xf32>
      %42 = arith.mulf %41, %15 : vector<128x128xf32>
      %43 = arith.addf %39, %42 : vector<128x128xf32>
      %cst_35 = arith.constant 0.000000e+00 : f32
      %44 = vector.broadcast %cst_35 : f32 to vector<128x128xf32>
      %45 = arith.maximumf %43, %44 : vector<128x128xf32>
      %c0_36 = arith.constant 0 : index
      %c0_37 = arith.constant 0 : index
      %c0_38 = arith.constant 0 : index
      %46 = vector.load %arg12[%c0_36, %c0_37, %c0_38] : memref<1x128x128xf32, #tpu.memory_space<vmem>>, vector<1x128x128xf32>
      %47 = vector.shape_cast %46 : vector<1x128x128xf32> to vector<128x128xf32>
      %48 = vector.shape_cast %45 : vector<128x128xf32> to vector<1x128x128xf32>
      tpu.vector_store %arg12[%c0_36, %c0_37, %c0_38], %48 {strides = array<i32>} : memref<1x128x128xf32, #tpu.memory_space<vmem>>, vector<1x128x128xf32>,
    } else {
    }
    return
  }
  func.func @transform_0(%arg0: i32, %arg1: i32, %arg2: i32) -> (i32, i32, i32) {
    %c0_i32 = arith.constant 0 : i32
    %c0_i32_0 = arith.constant 0 : i32
    return %arg0, %arg1, %c0_i32 : i32, i32, i32
  }
  func.func @transform_1(%arg0: i32, %arg1: i32, %arg2: i32) -> (i32, i32, i32) {
    %c0_i32 = arith.constant 0 : i32
    %c0_i32_0 = arith.constant 0 : i32
    return %arg0, %arg2, %c0_i32 : i32, i32, i32
  }
  func.func @transform_2(%arg0: i32, %arg1: i32, %arg2: i32) -> (i32, i32, i32) {
    %c0_i32 = arith.constant 0 : i32
    return %arg0, %arg1, %arg2 : i32, i32, i32
  }
  func.func @transform_3(%arg0: i32, %arg1: i32, %arg2: i32) -> (i32, i32) {
    %c0_i32 = arith.constant 0 : i32
    %c0_i32_0 = arith.constant 0 : i32
    %c0_i32_1 = arith.constant 0 : i32
    return %c0_i32, %c0_i32_0 : i32, i32
  }
  func.func @transform_4(%arg0: i32, %arg1: i32, %arg2: i32) -> (i32, i32) {
    %c0_i32 = arith.constant 0 : i32
    %c0_i32_0 = arith.constant 0 : i32
    %c0_i32_1 = arith.constant 0 : i32
    return %c0_i32, %c0_i32_0 : i32, i32
  }
  func.func @transform_5(%arg0: i32, %arg1: i32, %arg2: i32) -> (i32, i32) {
    %c0_i32 = arith.constant 0 : i32
    %c0_i32_0 = arith.constant 0 : i32
    %c0_i32_1 = arith.constant 0 : i32
    return %c0_i32, %c0_i32_0 : i32, i32
  }
  func.func @transform_6(%arg0: i32, %arg1: i32, %arg2: i32) -> (i32, i32) {
    %c0_i32 = arith.constant 0 : i32
    %c0_i32_0 = arith.constant 0 : i32
    %c0_i32_1 = arith.constant 0 : i32
    return %c0_i32, %c0_i32_0 : i32, i32
  }
  func.func @transform_7(%arg0: i32, %arg1: i32, %arg2: i32) -> (i32, i32) {
    %c0_i32 = arith.constant 0 : i32
    %c0_i32_0 = arith.constant 0 : i32
    %c0_i32_1 = arith.constant 0 : i32
    return %c0_i32, %c0_i32_0 : i32, i32
  }
  func.func @transform_8(%arg0: i32, %arg1: i32, %arg2: i32) -> (i32, i32) {
    %c0_i32 = arith.constant 0 : i32
    %c0_i32_0 = arith.constant 0 : i32
    %c0_i32_1 = arith.constant 0 : i32
    return %c0_i32, %c0_i32_0 : i32, i32
  }
  func.func @transform_9(%arg0: i32, %arg1: i32, %arg2: i32) -> (i32, i32, i32) {
    %c0_i32 = arith.constant 0 : i32
    %c0_i32_0 = arith.constant 0 : i32
    return %arg0, %arg1, %c0_i32 : i32, i32, i32
  }
}

</mosaic_0001>

<llo_original>
// kernel: tpu_custom_call.1
$region0: #{tpu_custom_call.1}
  #allocation0 [shape = 'u32[]', space=smem, size = 0x4, offset = 0x4, fixed_abs, tag = 'smem constant byte address 0x4 - core index']
  #allocation1 [shape = 'u32[144,128]{1,0:T(1,128)}', space=vmem, size = 0x12000, scoped, tag = 'internal scratch']
  #allocation2 [shape = 'f32[128,128]{1,0:T(8,128)}', space=vmem, size = 0x10000, scoped, tag = 'scratch operand']
  %s0 = inlined_call_operand.hbm [shape: f32[2,128,128], index: 0, kind: input, shape index: {}]
  %s1 = inlined_call_operand.hbm [shape: bf16[2,128,128], index: 1, kind: input, shape index: {}]
  %s2 = inlined_call_operand.hbm [shape: bf16[2,128,128], index: 2, kind: input, shape index: {}]
  %s3 = inlined_call_operand.hbm [shape: f32[128,128], index: 3, kind: input, shape index: {}]
  %s4 = inlined_call_operand.hbm [shape: f32[128,128], index: 4, kind: input, shape index: {}]
  %s5 = inlined_call_operand.vmem [shape: f32[1,128], index: 5, kind: input, shape index: {}]
  %s6 = inlined_call_operand.hbm [shape: f32[128,128], index: 6, kind: input, shape index: {}]
  %s7 = inlined_call_operand.hbm [shape: f32[128,128], index: 7, kind: input, shape index: {}]
  %s8 = inlined_call_operand.vmem [shape: f32[1,128], index: 8, kind: input, shape index: {}]
  %s9 = inlined_call_operand.hbm [shape: f32[2,128,128], index: 9, kind: output, shape index: {}]
  %s10 = sld [smem:[#allocation0]]
  $region105: #{tpu_custom_call.1} parent=0
    _
  %s12 = ssub.s32 1, %s10
  %s13 = scalar_select 0, %s12, %s10
  $region1: #{tpu_custom_call.1} parent=0
    #allocation3 [shape = 'u8[131072]{0}', space=vmem, size = 0x20000, scoped, tag = 'input window, operand 0']
    #allocation4 [shape = 's32[2]{0}', space=sflag, size = 0x8, scoped, tag = 'scoped memory for tpu_custom_call.1']
    #allocation5 [shape = 's32[2]{0}', space=sflag, size = 0x8, scoped, tag = 'scoped memory for tpu_custom_call.1']
    #allocation6 [shape = 'u8[65536]{0}', space=vmem, size = 0x10000, scoped, tag = 'input window, operand 1']
    #allocation7 [shape = 's32[2]{0}', space=sflag, size = 0x8, scoped, tag = 'scoped memory for tpu_custom_call.1']
    #allocation8 [shape = 'u8[65536]{0}', space=vmem, size = 0x10000, scoped, tag = 'input window, operand 2']
    #allocation9 [shape = 'u8[65536]{0}', space=vmem, size = 0x10000, scoped, tag = 'input window, operand 3, single buffered']
    #allocation10 [shape = 's32[1]{0}', space=sflag, size = 0x4, scoped, tag = 'scoped memory for tpu_custom_call.1']
    #allocation11 [shape = 'u8[65536]{0}', space=vmem, size = 0x10000, scoped, tag = 'input window, operand 4, single buffered']
    #allocation12 [shape = 'u8[65536]{0}', space=vmem, size = 0x10000, scoped, tag = 'input window, operand 6, single buffered']
    #allocation13 [shape = 's32[1]{0}', space=sflag, size = 0x4, scoped, tag = 'scoped memory for tpu_custom_call.1']
    #allocation14 [shape = 'u8[65536]{0}', space=vmem, size = 0x10000, scoped, tag = 'input window, operand 7, single buffered']
    #allocation15 [shape = 'u8[131072]{0}', space=vmem, size = 0x20000, scoped, tag = 'output window, operand 0']
    %14 = vsyncpa [#allocation4], 0
    %s15 = scalar_lea.sflag [#allocation4], 1
    %16 = vsyncpa %s15, 0
    %17 = vsyncpa [#allocation7], 0
    %s18 = scalar_lea.sflag [#allocation7], 1
    %19 = vsyncpa %s18, 0
    %20 = vsyncpa [#allocation10], 0
    %21 = vsyncpa [#allocation13], 0
    %22 = vsyncpa [#allocation5], 0
    %s23 = scalar_lea.sflag [#allocation5], 1
    %24 = vsyncpa %s23, 0
    loop: start=0, step=1, limit=4
    $region2: #{tpu_custom_call.1} parent=1 // loop_pre_header
      _
    $region3: #{tpu_custom_call.1} parent=1 // loop_header
      %s26 = sphi 0, %s30
      %p27 = scmp.ge.s32.totalorder %s26, 4
      %s33 = sphi 0, %s52
      %s34 = sphi 0, %s48
      %s35 = sphi 0, %s44
      %s36 = sphi 0, %s33
      %s37 = sphi 0, %s34
      %s38 = sphi 0, %s35
      %s39 = sphi 0, %s36
      %s40 = sphi 0, %s37
      %s41 = sphi 0, %s38
      %s57 = sphi 0, %s59
      %s60 = sphi 0, %s57
      %s61 = sphi 0, %s60
      %s77 = sphi 0, %s61
      %s85 = sphi 0, %s87
      %s88 = sphi 0, %s85
      %s89 = sphi 0, %s88
      %s105 = sphi 0, %s89
      %s115 = sphi 0, %s117
      %s118 = sphi 0, %s115
      %s119 = sphi 0, %s118
      %s135 = sphi 0, %s119
      %s139 = sphi 0, %s139
      %s141 = sphi 0, %s139
      %s142 = sphi 0, %s141
      %s156 = sphi 0, %s142
      %s160 = sphi 0, %s160
      %s162 = sphi 0, %s160
      %s163 = sphi 0, %s162
      %s177 = sphi 0, %s163
      %s181 = sphi 0, %s181
      %s183 = sphi 0, %s181
      %s184 = sphi 0, %s183
      %s198 = sphi 0, %s184
      %s202 = sphi 0, %s202
      %s204 = sphi 0, %s202
      %s205 = sphi 0, %s204
      %s219 = sphi 0, %s205
      %s223 = sphi 0, %s223
      %s225 = sphi 0, %s223
      %s226 = sphi 0, %s225
      %s240 = sphi 0, %s226
      %s244 = sphi 0, %s244
      %s246 = sphi 0, %s244
      %s247 = sphi 0, %s246
      %s261 = sphi 0, %s247
      %s269 = sphi 0, %s271
      %s272 = sphi 0, %s269
      %s273 = sphi 0, %s272
      %s289 = sphi 0, %s273
    $region4: #{tpu_custom_call.1} parent=1 // loop_header_branch
      %29 = sbr.rel (%p27) target = $region8
    $region5: #{tpu_custom_call.1} parent=1 // loop_body
      %s31 = ssub.s32 %s26, 1
      %s32 = ssub.s32 %s26, 2
      %s42 = sadd.s32 1, %s35
      %p43 = scmp.ge.s32.totalorder %s42, 1
      %s44 = scalar_select %p43, 0, %s42
      %s45 = sadd.s32 1, %s34
      %s46 = scalar_select %p43, %s45, %s34
      %p47 = scmp.ge.s32.totalorder %s46, 1
      %s48 = scalar_select %p47, 0, %s46
      %s49 = sadd.s32 1, %s33
      %s50 = scalar_select %p47, %s49, %s33
      %p51 = scmp.ge.s32.totalorder %s50, 2
      %s52 = scalar_select %p51, 0, %s50
      %s53 = ssub.s32 %s33, %s52
      %s54 = ssub.s32 %s34, %s48
      %s55 = sor.u32 %s53, %s54
      %p56 = scmp.eq.s32.totalorder %s55, 0
      %s58 = sadd.s32 %s57, 1
      %s59 = scalar_select %p56, %s57, %s58
      %p62 = pneg %p56
      %p63 = scmp.eq.s32.totalorder %s26, 1
      %p64 = por %p62, %p63
      %p65 = scmp.ne.s32.totalorder %s57, %s60
      %p66 = scmp.eq.s32.totalorder %s26, 0
      %p67 = por %p65, %p66
      %p68 = scmp.ne.s32.totalorder %s57, %s60
      %p69 = scmp.eq.s32.totalorder %s31, 1
      %p70 = por %p68, %p69
      %p71 = scmp.ne.s32.totalorder %s60, %s61
      %p72 = scmp.eq.s32.totalorder %s31, 0
      %p73 = por %p71, %p72
      %p74 = scmp.ne.s32.totalorder %s60, %s61
      %p75 = scmp.eq.s32.totalorder %s32, 1
      %p76 = por %p74, %p75
      %p78 = scmp.ne.s32.totalorder %s61, %s77
      %p79 = scmp.eq.s32.totalorder %s32, 0
      %p80 = por %p78, %p79
      %s81 = ssub.s32 %s33, %s52
      %s82 = ssub.s32 %s35, %s44
      %s83 = sor.u32 %s81, %s82
      %p84 = scmp.eq.s32.totalorder %s83, 0
      %s86 = sadd.s32 %s85, 1
      %s87 = scalar_select %p84, %s85, %s86
      %p90 = pneg %p84
      %p91 = scmp.eq.s32.totalorder %s26, 1
      %p92 = por %p90, %p91
      %p93 = scmp.ne.s32.totalorder %s85, %s88
      %p94 = scmp.eq.s32.totalorder %s26, 0
      %p95 = por %p93, %p94
      %p96 = scmp.ne.s32.totalorder %s85, %s88
      %p97 = scmp.eq.s32.totalorder %s31, 1
      %p98 = por %p96, %p97
      %p99 = scmp.ne.s32.totalorder %s88, %s89
      %p100 = scmp.eq.s32.totalorder %s31, 0
      %p101 = por %p99, %p100
      %p102 = scmp.ne.s32.totalorder %s88, %s89
      %p103 = scmp.eq.s32.totalorder %s32, 1
      %p104 = por %p102, %p103
      %p106 = scmp.ne.s32.totalorder %s89, %s105
      %p107 = scmp.eq.s32.totalorder %s32, 0
      %p108 = por %p106, %p107
      %s109 = ssub.s32 %s33, %s52
      %s110 = ssub.s32 %s34, %s48
      %s111 = sor.u32 %s109, %s110
      %s112 = ssub.s32 %s35, %s44
      %s113 = sor.u32 %s111, %s112
      %p114 = scmp.eq.s32.totalorder %s113, 0
      %s116 = sadd.s32 %s115, 1
      %s117 = scalar_select %p114, %s115, %s116
      %p120 = pneg %p114
      %p121 = scmp.eq.s32.totalorder %s26, 1
      %p122 = por %p120, %p121
      %p123 = scmp.ne.s32.totalorder %s115, %s118
      %p124 = scmp.eq.s32.totalorder %s26, 0
      %p125 = por %p123, %p124
      %p126 = scmp.ne.s32.totalorder %s115, %s118
      %p127 = scmp.eq.s32.totalorder %s31, 1
      %p128 = por %p126, %p127
      %p129 = scmp.ne.s32.totalorder %s118, %s119
      %p130 = scmp.eq.s32.totalorder %s31, 0
      %p131 = por %p129, %p130
      %p132 = scmp.ne.s32.totalorder %s118, %s119
      %p133 = scmp.eq.s32.totalorder %s32, 1
      %p134 = por %p132, %p133
      %p136 = scmp.ne.s32.totalorder %s119, %s135
      %p137 = scmp.eq.s32.totalorder %s32, 0
      %p138 = por %p136, %p137
      %s140 = sadd.s32 %s139, 1
      %p143 = scmp.eq.s32.totalorder %s26, 1
      %p144 = scmp.ne.s32.totalorder %s139, %s141
      %p145 = scmp.eq.s32.totalorder %s26, 0
      %p146 = por %p144, %p145
      %p147 = scmp.ne.s32.totalorder %s139, %s141
      %p148 = scmp.eq.s32.totalorder %s31, 1
      %p149 = por %p147, %p148
      %p150 = scmp.ne.s32.totalorder %s141, %s142
      %p151 = scmp.eq.s32.totalorder %s31, 0
      %p152 = por %p150, %p151
      %p153 = scmp.ne.s32.totalorder %s141, %s142
      %p154 = scmp.eq.s32.totalorder %s32, 1
      %p155 = por %p153, %p154
      %p157 = scmp.ne.s32.totalorder %s142, %s156
      %p158 = scmp.eq.s32.totalorder %s32, 0
      %p159 = por %p157, %p158
      %s161 = sadd.s32 %s160, 1
      %p164 = scmp.eq.s32.totalorder %s26, 1
      %p165 = scmp.ne.s32.totalorder %s160, %s162
      %p166 = scmp.eq.s32.totalorder %s26, 0
      %p167 = por %p165, %p166
      %p168 = scmp.ne.s32.totalorder %s160, %s162
      %p169 = scmp.eq.s32.totalorder %s31, 1
      %p170 = por %p168, %p169
      %p171 = scmp.ne.s32.totalorder %s162, %s163
      %p172 = scmp.eq.s32.totalorder %s31, 0
      %p173 = por %p171, %p172
      %p174 = scmp.ne.s32.totalorder %s162, %s163
      %p175 = scmp.eq.s32.totalorder %s32, 1
      %p176 = por %p174, %p175
      %p178 = scmp.ne.s32.totalorder %s163, %s177
      %p179 = scmp.eq.s32.totalorder %s32, 0
      %p180 = por %p178, %p179
      %s182 = sadd.s32 %s181, 1
      %p185 = scmp.eq.s32.totalorder %s26, 1
      %p186 = scmp.ne.s32.totalorder %s181, %s183
      %p187 = scmp.eq.s32.totalorder %s26, 0
      %p188 = por %p186, %p187
      %p189 = scmp.ne.s32.totalorder %s181, %s183
      %p190 = scmp.eq.s32.totalorder %s31, 1
      %p191 = por %p189, %p190
      %p192 = scmp.ne.s32.totalorder %s183, %s184
      %p193 = scmp.eq.s32.totalorder %s31, 0
      %p194 = por %p192, %p193
      %p195 = scmp.ne.s32.totalorder %s183, %s184
      %p196 = scmp.eq.s32.totalorder %s32, 1
      %p197 = por %p195, %p196
      %p199 = scmp.ne.s32.totalorder %s184, %s198
      %p200 = scmp.eq.s32.totalorder %s32, 0
      %p201 = por %p199, %p200
      %s203 = sadd.s32 %s202, 1
      %p206 = scmp.eq.s32.totalorder %s26, 1
      %p207 = scmp.ne.s32.totalorder %s202, %s204
      %p208 = scmp.eq.s32.totalorder %s26, 0
      %p209 = por %p207, %p208
      %p210 = scmp.ne.s32.totalorder %s202, %s204
      %p211 = scmp.eq.s32.totalorder %s31, 1
      %p212 = por %p210, %p211
      %p213 = scmp.ne.s32.totalorder %s204, %s205
      %p214 = scmp.eq.s32.totalorder %s31, 0
      %p215 = por %p213, %p214
      %p216 = scmp.ne.s32.totalorder %s204, %s205
      %p217 = scmp.eq.s32.totalorder %s32, 1
      %p218 = por %p216, %p217
      %p220 = scmp.ne.s32.totalorder %s205, %s219
      %p221 = scmp.eq.s32.totalorder %s32, 0
      %p222 = por %p220, %p221
      %s224 = sadd.s32 %s223, 1
      %p227 = scmp.eq.s32.totalorder %s26, 1
      %p228 = scmp.ne.s32.totalorder %s223, %s225
      %p229 = scmp.eq.s32.totalorder %s26, 0
      %p230 = por %p228, %p229
      %p231 = scmp.ne.s32.totalorder %s223, %s225
      %p232 = scmp.eq.s32.totalorder %s31, 1
      %p233 = por %p231, %p232
      %p234 = scmp.ne.s32.totalorder %s225, %s226
      %p235 = scmp.eq.s32.totalorder %s31, 0
      %p236 = por %p234, %p235
      %p237 = scmp.ne.s32.totalorder %s225, %s226
      %p238 = scmp.eq.s32.totalorder %s32, 1
      %p239 = por %p237, %p238
      %p241 = scmp.ne.s32.totalorder %s226, %s240
      %p242 = scmp.eq.s32.totalorder %s32, 0
      %p243 = por %p241, %p242
      %s245 = sadd.s32 %s244, 1
      %p248 = scmp.eq.s32.totalorder %s26, 1
      %p249 = scmp.ne.s32.totalorder %s244, %s246
      %p250 = scmp.eq.s32.totalorder %s26, 0
      %p251 = por %p249, %p250
      %p252 = scmp.ne.s32.totalorder %s244, %s246
      %p253 = scmp.eq.s32.totalorder %s31, 1
      %p254 = por %p252, %p253
      %p255 = scmp.ne.s32.totalorder %s246, %s247
      %p256 = scmp.eq.s32.totalorder %s31, 0
      %p257 = por %p255, %p256
      %p258 = scmp.ne.s32.totalorder %s246, %s247
      %p259 = scmp.eq.s32.totalorder %s32, 1
      %p260 = por %p258, %p259
      %p262 = scmp.ne.s32.totalorder %s247, %s261
      %p263 = scmp.eq.s32.totalorder %s32, 0
      %p264 = por %p262, %p263
      %s265 = ssub.s32 %s33, %s52
      %s266 = ssub.s32 %s34, %s48
      %s267 = sor.u32 %s265, %s266
      %p268 = scmp.eq.s32.totalorder %s267, 0
      %s270 = sadd.s32 %s269, 1
      %s271 = scalar_select %p268, %s269, %s270
      %p274 = pneg %p268
      %p275 = scmp.eq.s32.totalorder %s26, 1
      %p276 = por %p274, %p275
      %p277 = scmp.ne.s32.totalorder %s269, %s272
      %p278 = scmp.eq.s32.totalorder %s26, 0
      %p279 = por %p277, %p278
      %p280 = scmp.ne.s32.totalorder %s269, %s272
      %p281 = scmp.eq.s32.totalorder %s31, 1
      %p282 = por %p280, %p281
      %p283 = scmp.ne.s32.totalorder %s272, %s273
      %p284 = scmp.eq.s32.totalorder %s31, 0
      %p285 = por %p283, %p284
      %p286 = scmp.ne.s32.totalorder %s272, %s273
      %p287 = scmp.eq.s32.totalorder %s32, 1
      %p288 = por %p286, %p287
      %p290 = scmp.ne.s32.totalorder %s273, %s289
      %p291 = scmp.eq.s32.totalorder %s32, 0
      %p292 = por %p290, %p291
      %p293 = scmp.le.s32.totalorder 1, %s26
      %p294 = scmp.lt.s32.totalorder %s26, 3
      %p295 = pnand %p293, %p294
      %p296 = pneg %p295
      // Predicated region
      $region9: #{tpu_custom_call.1} parent=5 // pred_check
        _
      $region10: #{tpu_custom_call.1} parent=5 // pred_check_branch
        %298 = sbr.rel (%p295) target = $region12
      $region11: #{tpu_custom_call.1} parent=5 // pred_region
        %s299 = ssub.s32 %s26, 1
        // Predicated region
        $region13: #{tpu_custom_call.1} parent=11 // pred_check
          %p300 = pneg %p152
        $region14: #{tpu_custom_call.1} parent=11 // pred_check_branch
          %302 = sbr.rel (%p300) target = $region16
        $region15: #{tpu_custom_call.1} parent=11 // pred_region
          %s304 = ssub.s32 2048, 2048
          %305 = vsyncadd [#allocation10], %s304
          %s306 = sshll.u32 [#allocation9], 4
          %s307 = int_to_ptr.vmem [resolvable:$true] %s306
          %312 = dma.hbm_to_vmem [thread:$0]  %s3, 2048, %s307, [#allocation10], 128, 128, 8
        $region16: #{tpu_custom_call.1} parent=11 // pred_fallthru
          _
        // Predicated region
        $region17: #{tpu_custom_call.1} parent=11 // pred_check
          %p313 = pneg %p173
        $region18: #{tpu_custom_call.1} parent=11 // pred_check_branch
          %315 = sbr.rel (%p313) target = $region20
        $region19: #{tpu_custom_call.1} parent=11 // pred_region
          %s317 = ssub.s32 2048, 2048
          %318 = vsyncadd [#allocation10], %s317
          %s319 = sshll.u32 [#allocation11], 4
          %s320 = int_to_ptr.vmem [resolvable:$true] %s319
          %325 = dma.hbm_to_vmem [thread:$0]  %s4, 2048, %s320, [#allocation10], 128, 128, 8
        $region20: #{tpu_custom_call.1} parent=11 // pred_fallthru
          _
        // Predicated region
        $region21: #{tpu_custom_call.1} parent=11 // pred_check
          %p326 = pneg %p194
        $region22: #{tpu_custom_call.1} parent=11 // pred_check_branch
          %328 = sbr.rel (%p326) target = $region24
        $region23: #{tpu_custom_call.1} parent=11 // pred_region
          _
        $region24: #{tpu_custom_call.1} parent=11 // pred_fallthru
          _
        // Predicated region
        $region25: #{tpu_custom_call.1} parent=11 // pred_check
          %p329 = pneg %p215
        $region26: #{tpu_custom_call.1} parent=11 // pred_check_branch
          %331 = sbr.rel (%p329) target = $region28
        $region27: #{tpu_custom_call.1} parent=11 // pred_region
          %s333 = ssub.s32 2048, 2048
          %334 = vsyncadd [#allocation13], %s333
          %s335 = sshll.u32 [#allocation12], 4
          %s336 = int_to_ptr.vmem [resolvable:$true] %s335
          %341 = dma.hbm_to_vmem [thread:$0]  %s6, 2048, %s336, [#allocation13], 128, 128, 8
        $region28: #{tpu_custom_call.1} parent=11 // pred_fallthru
          _
        // Predicated region
        $region29: #{tpu_custom_call.1} parent=11 // pred_check
          %p342 = pneg %p236
        $region30: #{tpu_custom_call.1} parent=11 // pred_check_branch
          %344 = sbr.rel (%p342) target = $region32
        $region31: #{tpu_custom_call.1} parent=11 // pred_region
          %s346 = ssub.s32 2048, 2048
          %347 = vsyncadd [#allocation13], %s346
          %s348 = sshll.u32 [#allocation14], 4
          %s349 = int_to_ptr.vmem [resolvable:$true] %s348
          %354 = dma.hbm_to_vmem [thread:$0]  %s7, 2048, %s349, [#allocation13], 128, 128, 8
        $region32: #{tpu_custom_call.1} parent=11 // pred_fallthru
          _
        // Predicated region
        $region33: #{tpu_custom_call.1} parent=11 // pred_check
          %p355 = pneg %p257
        $region34: #{tpu_custom_call.1} parent=11 // pred_check_branch
          %357 = sbr.rel (%p355) target = $region36
        $region35: #{tpu_custom_call.1} parent=11 // pred_region
          _
        $region36: #{tpu_custom_call.1} parent=11 // pred_fallthru
          _
      $region12: #{tpu_custom_call.1} parent=5 // pred_fallthru
        _
      %p358 = scmp.lt.s32.totalorder %s26, 2
      // Predicated region
      $region37: #{tpu_custom_call.1} parent=5 // pred_check
        %p359 = pneg %p358
      $region38: #{tpu_custom_call.1} parent=5 // pred_check_branch
        %361 = sbr.rel (%p359) target = $region40
      $region39: #{tpu_custom_call.1} parent=5 // pred_region
        // Predicated region
        $region41: #{tpu_custom_call.1} parent=39 // pred_check
          %p362 = pneg %p67
        $region42: #{tpu_custom_call.1} parent=39 // pred_check_branch
          %364 = sbr.rel (%p362) target = $region44
        $region43: #{tpu_custom_call.1} parent=39 // pred_region
          %s365 = sand.u32 %s57, 1
          %s366 = scalar_lea.sflag [#allocation4], %s365
          %s367 = sand.u32 %s57, 1
          %s368 = smul.addr %s367, 128
          %s369 = scalar_lea.vmem [#allocation3], %s368
          %s370 = smul.u32 16, %s34
          %s372 = ssub.s32 2048, 2048
          %373 = vsyncadd %s366, %s372
          %s374 = smul.addr %s33, 16
          %s375 = sadd.s32 %s370, %s374
          %s376 = smul.addr %s375, 128
          %s377 = scalar_lea.hbm %s0, %s376
          %s378 = sshll.u32 %s369, 4
          %s379 = int_to_ptr.vmem [resolvable:$true] %s378
          %384 = dma.hbm_to_vmem [thread:$0]  %s377, 2048, %s379, %s366, 128, 128, 8
        $region44: #{tpu_custom_call.1} parent=39 // pred_fallthru
          _
        // Predicated region
        $region45: #{tpu_custom_call.1} parent=39 // pred_check
          %p385 = pneg %p95
        $region46: #{tpu_custom_call.1} parent=39 // pred_check_branch
          %387 = sbr.rel (%p385) target = $region48
        $region47: #{tpu_custom_call.1} parent=39 // pred_region
          %s388 = sand.u32 %s26, 1
          %s389 = scalar_lea.sflag [#allocation7], %s388
          %s390 = sand.u32 %s85, 1
          %s391 = smul.addr %s390, 64
          %s392 = scalar_lea.vmem [#allocation6], %s391
          %s393 = smul.u32 16, %s35
          %s395 = ssub.s32 1024, 1024
          %396 = vsyncadd %s389, %s395
          %s397 = smul.addr %s33, 16
          %s398 = sadd.s32 %s393, %s397
          %s399 = smul.addr %s398, 64
          %s400 = scalar_lea.hbm %s1, %s399
          %s401 = sshll.u32 %s392, 4
          %s402 = int_to_ptr.vmem [resolvable:$true] %s401
          %407 = dma.hbm_to_vmem [thread:$0]  %s400, 1024, %s402, %s389, 64, 64, 4
        $region48: #{tpu_custom_call.1} parent=39 // pred_fallthru
          _
        // Predicated region
        $region49: #{tpu_custom_call.1} parent=39 // pred_check
          %p408 = pneg %p125
        $region50: #{tpu_custom_call.1} parent=39 // pred_check_branch
          %410 = sbr.rel (%p408) target = $region52
        $region51: #{tpu_custom_call.1} parent=39 // pred_region
          %s411 = sand.u32 %s26, 1
          %s412 = scalar_lea.sflag [#allocation7], %s411
          %s413 = sand.u32 %s115, 1
          %s414 = smul.addr %s413, 64
          %s415 = scalar_lea.vmem [#allocation8], %s414
          %s416 = smul.u32 16, %s34
          %s418 = ssub.s32 1024, 1024
          %419 = vsyncadd %s412, %s418
          %s420 = sadd.s32 %s35, %s416
          %s421 = smul.addr %s33, 16
          %s422 = sadd.s32 %s420, %s421
          %s423 = smul.addr %s422, 64
          %s424 = scalar_lea.hbm %s2, %s423
          %s425 = sshll.u32 %s415, 4
          %s426 = int_to_ptr.vmem [resolvable:$true] %s425
          %431 = dma.hbm_to_vmem [thread:$0]  %s424, 1024, %s426, %s412, 64, 64, 4
        $region52: #{tpu_custom_call.1} parent=39 // pred_fallthru
          _
      $region40: #{tpu_custom_call.1} parent=5 // pred_fallthru
        _
      %p432 = scmp.le.s32.totalorder 1, %s26
      %p433 = scmp.lt.s32.totalorder %s26, 3
      %p434 = pnand %p432, %p433
      %p435 = pneg %p434
      // Predicated region
      $region53: #{tpu_custom_call.1} parent=5 // pred_check
        _
      $region54: #{tpu_custom_call.1} parent=5 // pred_check_branch
        %437 = sbr.rel (%p434) target = $region56
      $region55: #{tpu_custom_call.1} parent=5 // pred_region
        %s438 = ssub.s32 %s26, 1
        %s439 = sand.u32 %s60, 1
        %s440 = scalar_lea.sflag [#allocation4], %s439
        %s441 = sand.u32 %s60, 1
        %s442 = smul.addr %s441, 128
        %s443 = scalar_lea.vmem [#allocation3], %s442
        // Predicated region
        $region57: #{tpu_custom_call.1} parent=55 // pred_check
          %p444 = pneg %p73
        $region58: #{tpu_custom_call.1} parent=55 // pred_check_branch
          %446 = sbr.rel (%p444) target = $region60
        $region59: #{tpu_custom_call.1} parent=55 // pred_region
          %447 = dma.done %s440, 2048
        $region60: #{tpu_custom_call.1} parent=55 // pred_fallthru
          _
        %s448 = sand.u32 %s31, 1
        %s449 = scalar_lea.sflag [#allocation7], %s448
        %s450 = sand.u32 %s88, 1
        %s451 = smul.addr %s450, 64
        %s452 = scalar_lea.vmem [#allocation6], %s451
        // Predicated region
        $region61: #{tpu_custom_call.1} parent=55 // pred_check
          %p453 = pneg %p101
        $region62: #{tpu_custom_call.1} parent=55 // pred_check_branch
          %455 = sbr.rel (%p453) target = $region64
        $region63: #{tpu_custom_call.1} parent=55 // pred_region
          %456 = dma.done %s449, 1024
        $region64: #{tpu_custom_call.1} parent=55 // pred_fallthru
          _
        %s457 = sand.u32 %s31, 1
        %s458 = scalar_lea.sflag [#allocation7], %s457
        %s459 = sand.u32 %s118, 1
        %s460 = smul.addr %s459, 64
        %s461 = scalar_lea.vmem [#allocation8], %s460
        // Predicated region
        $region65: #{tpu_custom_call.1} parent=55 // pred_check
          %p462 = pneg %p131
        $region66: #{tpu_custom_call.1} parent=55 // pred_check_branch
          %464 = sbr.rel (%p462) target = $region68
        $region67: #{tpu_custom_call.1} parent=55 // pred_region
          %465 = dma.done %s458, 1024
        $region68: #{tpu_custom_call.1} parent=55 // pred_fallthru
          _
        // Predicated region
        $region69: #{tpu_custom_call.1} parent=55 // pred_check
          %p466 = pneg %p152
        $region70: #{tpu_custom_call.1} parent=55 // pred_check_branch
          %468 = sbr.rel (%p466) target = $region72
        $region71: #{tpu_custom_call.1} parent=55 // pred_region
          %469 = dma.done [#allocation10], 2048
        $region72: #{tpu_custom_call.1} parent=55 // pred_fallthru
          _
        // Predicated region
        $region73: #{tpu_custom_call.1} parent=55 // pred_check
          %p470 = pneg %p173
        $region74: #{tpu_custom_call.1} parent=55 // pred_check_branch
          %472 = sbr.rel (%p470) target = $region76
        $region75: #{tpu_custom_call.1} parent=55 // pred_region
          %473 = dma.done [#allocation10], 2048
        $region76: #{tpu_custom_call.1} parent=55 // pred_fallthru
          _
        // Predicated region
        $region77: #{tpu_custom_call.1} parent=55 // pred_check
          %p474 = pneg %p215
        $region78: #{tpu_custom_call.1} parent=55 // pred_check_branch
          %476 = sbr.rel (%p474) target = $region80
        $region79: #{tpu_custom_call.1} parent=55 // pred_region
          %477 = dma.done [#allocation13], 2048
        $region80: #{tpu_custom_call.1} parent=55 // pred_fallthru
          _
        // Predicated region
        $region81: #{tpu_custom_call.1} parent=55 // pred_check
          %p478 = pneg %p236
        $region82: #{tpu_custom_call.1} parent=55 // pred_check_branch
          %480 = sbr.rel (%p478) target = $region84
        $region83: #{tpu_custom_call.1} parent=55 // pred_region
          %481 = dma.done [#allocation13], 2048
        $region84: #{tpu_custom_call.1} parent=55 // pred_fallthru
          _
        %s482 = sand.u32 %s60, 1
        %s483 = scalar_lea.sflag [#allocation4], %s482
        %s484 = sand.u32 %s60, 1
        %s485 = smul.addr %s484, 128
        %s486 = scalar_lea.vmem [#allocation3], %s485
        %p487 = pneg %p73
        %p488 = pneg %p70
        %s489 = sand.u32 %s31, 1
        %s490 = scalar_lea.sflag [#allocation7], %s489
        %s491 = sand.u32 %s88, 1
        %s492 = smul.addr %s491, 64
        %s493 = scalar_lea.vmem [#allocation6], %s492
        %p494 = pneg %p101
        %p495 = pneg %p98
        %s496 = sand.u32 %s31, 1
        %s497 = scalar_lea.sflag [#allocation7], %s496
        %s498 = sand.u32 %s118, 1
        %s499 = smul.addr %s498, 64
        %s500 = scalar_lea.vmem [#allocation8], %s499
        %p501 = pneg %p131
        %p502 = pneg %p128
        %p503 = pneg %p152
        %p504 = pneg %p149
        %p505 = pneg %p173
        %p506 = pneg %p170
        %p507 = pneg %p194
        %p508 = pneg %p191
        %p509 = pneg %p215
        %p510 = pneg %p212
        %p511 = pneg %p236
        %p512 = pneg %p233
        %p513 = pneg %p257
        %p514 = pneg %p254
        %p515 = pneg %p285
        %p516 = pneg %p282
        %s517 = sand.u32 %s272, 1
        %s518 = scalar_lea.sflag [#allocation5], %s517
        %s519 = sand.u32 %s272, 1
        %s520 = smul.addr %s519, 128
        %s521 = scalar_lea.vmem [#allocation15], %s520
        %s522 = smul.u32 16, %s37
        %s523 = smul.u32 16, %s38
        %s524 = smul.u32 16, %s37
        %s525 = smul.u32 16, %s37
        %p527 = scmp.eq.s32.totalorder %s38, 0
        // Predicated region
        $region85: #{tpu_custom_call.1} parent=55 // pred_check
          %p528 = pneg %p527
        $region86: #{tpu_custom_call.1} parent=55 // pred_check_branch
          %530 = sbr.rel (%p528) target = $region88
        $region87: #{tpu_custom_call.1} parent=55 // pred_region
          %531 = vst [vmem:[#allocation2] sm:$0xff] 0.0
          %532 = vst [vmem:[#allocation2 + $0x8] sm:$0xff] 0.0
          %533 = vst [vmem:[#allocation2 + $0x10] sm:$0xff] 0.0
          %534 = vst [vmem:[#allocation2 + $0x18] sm:$0xff] 0.0
          %535 = vst [vmem:[#allocation2 + $0x20] sm:$0xff] 0.0
          %536 = vst [vmem:[#allocation2 + $0x28] sm:$0xff] 0.0
          %537 = vst [vmem:[#allocation2 + $0x30] sm:$0xff] 0.0
          %538 = vst [vmem:[#allocation2 + $0x38] sm:$0xff] 0.0
          %539 = vst [vmem:[#allocation2 + $0x40] sm:$0xff] 0.0
          %540 = vst [vmem:[#allocation2 + $0x48] sm:$0xff] 0.0
          %541 = vst [vmem:[#allocation2 + $0x50] sm:$0xff] 0.0
          %542 = vst [vmem:[#allocation2 + $0x58] sm:$0xff] 0.0
          %543 = vst [vmem:[#allocation2 + $0x60] sm:$0xff] 0.0
          %544 = vst [vmem:[#allocation2 + $0x68] sm:$0xff] 0.0
          %545 = vst [vmem:[#allocation2 + $0x70] sm:$0xff] 0.0
          %546 = vst [vmem:[#allocation2 + $0x78] sm:$0xff] 0.0
        $region88: #{tpu_custom_call.1} parent=55 // pred_fallthru
          _
        %v547 = vld [vmem:[#allocation2] sm:$0xff]
        %v548 = vld [vmem:[#allocation2 + $0x8] sm:$0xff]
        %v549 = vld [vmem:[#allocation2 + $0x10] sm:$0xff]
        %v550 = vld [vmem:[#allocation2 + $0x18] sm:$0xff]
        %v551 = vld [vmem:[#allocation2 + $0x20] sm:$0xff]
        %v552 = vld [vmem:[#allocation2 + $0x28] sm:$0xff]
        %v553 = vld [vmem:[#allocation2 + $0x30] sm:$0xff]
        %v554 = vld [vmem:[#allocation2 + $0x38] sm:$0xff]
        %v555 = vld [vmem:[#allocation2 + $0x40] sm:$0xff]
        %v556 = vld [vmem:[#allocation2 + $0x48] sm:$0xff]
        %v557 = vld [vmem:[#allocation2 + $0x50] sm:$0xff]
        %v558 = vld [vmem:[#allocation2 + $0x58] sm:$0xff]
        %v559 = vld [vmem:[#allocation2 + $0x60] sm:$0xff]
        %v560 = vld [vmem:[#allocation2 + $0x68] sm:$0xff]
        %v561 = vld [vmem:[#allocation2 + $0x70] sm:$0xff]
        %v562 = vld [vmem:[#allocation2 + $0x78] sm:$0xff]
        %v563 = vld [vmem:[%s461] sm:$0xf]
        %v564 = vld [vmem:[%s461 + $0x4] sm:$0xf]
        %v565 = vld [vmem:[%s461 + $0x8] sm:$0xf]
        %v566 = vld [vmem:[%s461 + $0xc] sm:$0xf]
        %v567 = vld [vmem:[%s461 + $0x10] sm:$0xf]
        %v568 = vld [vmem:[%s461 + $0x14] sm:$0xf]
        %v569 = vld [vmem:[%s461 + $0x18] sm:$0xf]
        %v570 = vld [vmem:[%s461 + $0x1c] sm:$0xf]
        %v571 = vld [vmem:[%s461 + $0x20] sm:$0xf]
        %v572 = vld [vmem:[%s461 + $0x24] sm:$0xf]
        %v573 = vld [vmem:[%s461 + $0x28] sm:$0xf]
        %v574 = vld [vmem:[%s461 + $0x2c] sm:$0xf]
        %v575 = vld [vmem:[%s461 + $0x30] sm:$0xf]
        %v576 = vld [vmem:[%s461 + $0x34] sm:$0xf]
        %v577 = vld [vmem:[%s461 + $0x38] sm:$0xf]
        %v578 = vld [vmem:[%s461 + $0x3c] sm:$0xf]
        %v579 = vld [vmem:[%s452] sm:$0xf]
        %v580 = vld [vmem:[%s452 + $0x4] sm:$0xf]
        %v581 = vld [vmem:[%s452 + $0x8] sm:$0xf]
        %v582 = vld [vmem:[%s452 + $0xc] sm:$0xf]
        %v583 = vld [vmem:[%s452 + $0x10] sm:$0xf]
        %v584 = vld [vmem:[%s452 + $0x14] sm:$0xf]
        %v585 = vld [vmem:[%s452 + $0x18] sm:$0xf]
        %v586 = vld [vmem:[%s452 + $0x1c] sm:$0xf]
        %v587 = vld [vmem:[%s452 + $0x20] sm:$0xf]
        %v588 = vld [vmem:[%s452 + $0x24] sm:$0xf]
        %v589 = vld [vmem:[%s452 + $0x28] sm:$0xf]
        %v590 = vld [vmem:[%s452 + $0x2c] sm:$0xf]
        %v591 = vld [vmem:[%s452 + $0x30] sm:$0xf]
        %v592 = vld [vmem:[%s452 + $0x34] sm:$0xf]
        %v593 = vld [vmem:[%s452 + $0x38] sm:$0xf]
        %v594 = vld [vmem:[%s452 + $0x3c] sm:$0xf]
        %v611 = vunpack.c.l.b16 %v563
        %v612 = vunpack.c.l.b16 %v564
        %v613 = vunpack.c.l.b16 %v565
        %v614 = vunpack.c.l.b16 %v566
        %v615 = vunpack.c.l.b16 %v567
        %v616 = vunpack.c.l.b16 %v568
        %v617 = vunpack.c.l.b16 %v569
        %v618 = vunpack.c.l.b16 %v570
        %v619 = vunpack.c.l.b16 %v571
        %v620 = vunpack.c.l.b16 %v572
        %v621 = vunpack.c.l.b16 %v573
        %v622 = vunpack.c.l.b16 %v574
        %v623 = vunpack.c.l.b16 %v575
        %v624 = vunpack.c.l.b16 %v576
        %v625 = vunpack.c.l.b16 %v577
        %v626 = vunpack.c.l.b16 %v578
        %v627 = vpack.c.b16 %v612, %v611
        %v628 = vpack.c.b16 %v614, %v613
        %v629 = vpack.c.b16 %v616, %v615
        %v630 = vpack.c.b16 %v618, %v617
        %v631 = vpack.c.b16 %v620, %v619
        %v632 = vpack.c.b16 %v622, %v621
        %v633 = vpack.c.b16 %v624, %v623
        %v634 = vpack.c.b16 %v626, %v625
        %v659 = vunpack.c.l.b16 %v579
        %v660 = vunpack.c.l.b16 %v580
        %v661 = vunpack.c.l.b16 %v581
        %v662 = vunpack.c.l.b16 %v582
        %v663 = vunpack.c.l.b16 %v583
        %v664 = vunpack.c.l.b16 %v584
        %v665 = vunpack.c.l.b16 %v585
        %v666 = vunpack.c.l.b16 %v586
        %v667 = vunpack.c.l.b16 %v587
        %v668 = vunpack.c.l.b16 %v588
        %v669 = vunpack.c.l.b16 %v589
        %v670 = vunpack.c.l.b16 %v590
        %v671 = vunpack.c.l.b16 %v591
        %v672 = vunpack.c.l.b16 %v592
        %v673 = vunpack.c.l.b16 %v593
        %v674 = vunpack.c.l.b16 %v594
        %v675 = vpack.c.b16 %v660, %v659
        %v676 = vpack.c.b16 %v662, %v661
        %v677 = vpack.c.b16 %v664, %v663
        %v678 = vpack.c.b16 %v666, %v665
        %v679 = vpack.c.b16 %v668, %v667
        %v680 = vpack.c.b16 %v670, %v669
        %v681 = vpack.c.b16 %v672, %v671
        %v682 = vpack.c.b16 %v674, %v673
        %691 = vmatprep.subr.bf16.mxu0 0
        %692 = vmatpush1.bf16.msra.mxu0 %v675
        %693 = vmatprep.subr.bf16.mxu0 0
        %694 = vmatpush1.bf16.msra.mxu0 %v676
        %695 = vmatprep.subr.bf16.mxu0 0
        %696 = vmatpush1.bf16.msra.mxu0 %v677
        %697 = vmatprep.subr.bf16.mxu0 0
        %698 = vmatpush1.bf16.msra.mxu0 %v678
        %699 = vmatprep.subr.bf16.mxu0 0
        %700 = vmatpush1.bf16.msra.mxu0 %v679
        %701 = vmatprep.subr.bf16.mxu0 0
        %702 = vmatpush1.bf16.msra.mxu0 %v680
        %703 = vmatprep.subr.bf16.mxu0 0
        %704 = vmatpush1.bf16.msra.mxu0 %v681
        %705 = vmatprep.subr.bf16.mxu0 0
        %706 = vmatpush1.bf16.msra.mxu0 %v682
        %707 = vmatprep.subr.bf16.mxu0 0
        %708 = vmatpush1.bf16.msra.mxu0 0
        %709 = vmatprep.subr.bf16.mxu0 0
        %710 = vmatpush1.bf16.msra.mxu0 0
        %711 = vmatprep.subr.bf16.mxu0 0
        %712 = vmatpush1.bf16.msra.mxu0 0
        %713 = vmatprep.subr.bf16.mxu0 0
        %714 = vmatpush1.bf16.msra.mxu0 0
        %715 = vmatprep.subr.bf16.mxu0 0
        %716 = vmatpush1.bf16.msra.mxu0 0
        %717 = vmatprep.subr.bf16.mxu0 0
        %718 = vmatpush1.bf16.msra.mxu0 0
        %719 = vmatprep.subr.bf16.mxu0 0
        %720 = vmatpush1.bf16.msra.mxu0 0
        %721 = vmatprep.subr.bf16.mxu0 0
        %722 = vmatpush1.bf16.msra.mxu0 0
        %723 = vmatprep.mubr.bf16.mxu0 0
        %724 = vmatmul.mubr.bf16.gmra.mrb[0].mxu0 %v627
        %v725 = vpop.f32.mrb[0].mxu0
        %v726 = vadd.f32 0.0, %v725
        %v727 = vpop.f32.mrb[0].mxu0
        %v728 = vpop.f32.mrb[0].mxu0
        %v729 = vadd.f32 0.0, %v728
        %v730 = vpop.f32.mrb[0].mxu0
        %731 = vmatprep.mubr.bf16.mxu0 0
        %732 = vmatmul.mubr.bf16.gmra.mrb[0].mxu0 %v628
        %v733 = vpop.f32.mrb[0].mxu0
        %v734 = vadd.f32 0.0, %v733
        %v735 = vpop.f32.mrb[0].mxu0
        %v736 = vpop.f32.mrb[0].mxu0
        %v737 = vadd.f32 0.0, %v736
        %v738 = vpop.f32.mrb[0].mxu0
        %739 = vmatprep.mubr.bf16.mxu0 0
        %740 = vmatmul.mubr.bf16.gmra.mrb[0].mxu0 %v629
        %v741 = vpop.f32.mrb[0].mxu0
        %v742 = vadd.f32 0.0, %v741
        %v743 = vpop.f32.mrb[0].mxu0
        %v744 = vpop.f32.mrb[0].mxu0
        %v745 = vadd.f32 0.0, %v744
        %v746 = vpop.f32.mrb[0].mxu0
        %747 = vmatprep.mubr.bf16.mxu0 0
        %748 = vmatmul.mubr.bf16.gmra.mrb[0].mxu0 %v630
        %v749 = vpop.f32.mrb[0].mxu0
        %v750 = vadd.f32 0.0, %v749
        %v751 = vpop.f32.mrb[0].mxu0
        %v752 = vpop.f32.mrb[0].mxu0
        %v753 = vadd.f32 0.0, %v752
        %v754 = vpop.f32.mrb[0].mxu0
        %755 = vmatprep.mubr.bf16.mxu0 0
        %756 = vmatmul.mubr.bf16.gmra.mrb[0].mxu0 %v631
        %v757 = vpop.f32.mrb[0].mxu0
        %v758 = vadd.f32 0.0, %v757
        %v759 = vpop.f32.mrb[0].mxu0
        %v760 = vpop.f32.mrb[0].mxu0
        %v761 = vadd.f32 0.0, %v760
        %v762 = vpop.f32.mrb[0].mxu0
        %763 = vmatprep.mubr.bf16.mxu0 0
        %764 = vmatmul.mubr.bf16.gmra.mrb[0].mxu0 %v632
        %v765 = vpop.f32.mrb[0].mxu0
        %v766 = vadd.f32 0.0, %v765
        %v767 = vpop.f32.mrb[0].mxu0
        %v768 = vpop.f32.mrb[0].mxu0
        %v769 = vadd.f32 0.0, %v768
        %v770 = vpop.f32.mrb[0].mxu0
        %771 = vmatprep.mubr.bf16.mxu0 0
        %772 = vmatmul.mubr.bf16.gmra.mrb[0].mxu0 %v633
        %v773 = vpop.f32.mrb[0].mxu0
        %v774 = vadd.f32 0.0, %v773
        %v775 = vpop.f32.mrb[0].mxu0
        %v776 = vpop.f32.mrb[0].mxu0
        %v777 = vadd.f32 0.0, %v776
        %v778 = vpop.f32.mrb[0].mxu0
        %779 = vmatprep.mubr.bf16.mxu0 0
        %780 = vmatmul.mubr.bf16.gmra.mrb[0].mxu0 %v634
        %v781 = vpop.f32.mrb[0].mxu0
        %v782 = vadd.f32 0.0, %v781
        %v783 = vpop.f32.mrb[0].mxu0
        %v784 = vpop.f32.mrb[0].mxu0
        %v785 = vadd.f32 0.0, %v784
        %v786 = vpop.f32.mrb[0].mxu0
        %787 = vdwg.mxu0
        %v788 = vadd.f32 %v547, %v726
        %v789 = vadd.f32 %v548, %v729
        %v790 = vadd.f32 %v549, %v734
        %v791 = vadd.f32 %v550, %v737
        %v792 = vadd.f32 %v551, %v742
        %v793 = vadd.f32 %v552, %v745
        %v794 = vadd.f32 %v553, %v750
        %v795 = vadd.f32 %v554, %v753
        %v796 = vadd.f32 %v555, %v758
        %v797 = vadd.f32 %v556, %v761
        %v798 = vadd.f32 %v557, %v766
        %v799 = vadd.f32 %v558, %v769
        %v800 = vadd.f32 %v559, %v774
        %v801 = vadd.f32 %v560, %v777
        %v802 = vadd.f32 %v561, %v782
        %v803 = vadd.f32 %v562, %v785
        %804 = vst [vmem:[#allocation2] sm:$0xff] %v788
        %805 = vst [vmem:[#allocation2 + $0x8] sm:$0xff] %v789
        %806 = vst [vmem:[#allocation2 + $0x10] sm:$0xff] %v790
        %807 = vst [vmem:[#allocation2 + $0x18] sm:$0xff] %v791
        %808 = vst [vmem:[#allocation2 + $0x20] sm:$0xff] %v792
        %809 = vst [vmem:[#allocation2 + $0x28] sm:$0xff] %v793
        %810 = vst [vmem:[#allocation2 + $0x30] sm:$0xff] %v794
        %811 = vst [vmem:[#allocation2 + $0x38] sm:$0xff] %v795
        %812 = vst [vmem:[#allocation2 + $0x40] sm:$0xff] %v796
        %813 = vst [vmem:[#allocation2 + $0x48] sm:$0xff] %v797
        %814 = vst [vmem:[#allocation2 + $0x50] sm:$0xff] %v798
        %815 = vst [vmem:[#allocation2 + $0x58] sm:$0xff] %v799
        %816 = vst [vmem:[#allocation2 + $0x60] sm:$0xff] %v800
        %817 = vst [vmem:[#allocation2 + $0x68] sm:$0xff] %v801
        %818 = vst [vmem:[#allocation2 + $0x70] sm:$0xff] %v802
        %819 = vst [vmem:[#allocation2 + $0x78] sm:$0xff] %v803
        // Predicated region
        $region89: #{tpu_custom_call.1} parent=55 // pred_check
          %p820 = pneg %p527
        $region90: #{tpu_custom_call.1} parent=55 // pred_check_branch
          %822 = sbr.rel (%p820) target = $region92
        $region91: #{tpu_custom_call.1} parent=55 // pred_region
          %v823 = vld [vmem:[%s443] sm:$0xff]
          %v824 = vld [vmem:[%s443 + $0x8] sm:$0xff]
          %v825 = vld [vmem:[%s443 + $0x10] sm:$0xff]
          %v826 = vld [vmem:[%s443 + $0x18] sm:$0xff]
          %v827 = vld [vmem:[%s443 + $0x20] sm:$0xff]
          %v828 = vld [vmem:[%s443 + $0x28] sm:$0xff]
          %v829 = vld [vmem:[%s443 + $0x30] sm:$0xff]
          %v830 = vld [vmem:[%s443 + $0x38] sm:$0xff]
          %v831 = vld [vmem:[%s443 + $0x40] sm:$0xff]
          %v832 = vld [vmem:[%s443 + $0x48] sm:$0xff]
          %v833 = vld [vmem:[%s443 + $0x50] sm:$0xff]
          %v834 = vld [vmem:[%s443 + $0x58] sm:$0xff]
          %v835 = vld [vmem:[%s443 + $0x60] sm:$0xff]
          %v836 = vld [vmem:[%s443 + $0x68] sm:$0xff]
          %v837 = vld [vmem:[%s443 + $0x70] sm:$0xff]
          %v838 = vld [vmem:[%s443 + $0x78] sm:$0xff]
          %v839 = vld [vmem:[#allocation2] sm:$0xff]
          %v840 = vld [vmem:[#allocation2 + $0x8] sm:$0xff]
          %v841 = vld [vmem:[#allocation2 + $0x10] sm:$0xff]
          %v842 = vld [vmem:[#allocation2 + $0x18] sm:$0xff]
          %v843 = vld [vmem:[#allocation2 + $0x20] sm:$0xff]
          %v844 = vld [vmem:[#allocation2 + $0x28] sm:$0xff]
          %v845 = vld [vmem:[#allocation2 + $0x30] sm:$0xff]
          %v846 = vld [vmem:[#allocation2 + $0x38] sm:$0xff]
          %v847 = vld [vmem:[#allocation2 + $0x40] sm:$0xff]
          %v848 = vld [vmem:[#allocation2 + $0x48] sm:$0xff]
          %v849 = vld [vmem:[#allocation2 + $0x50] sm:$0xff]
          %v850 = vld [vmem:[#allocation2 + $0x58] sm:$0xff]
          %v851 = vld [vmem:[#allocation2 + $0x60] sm:$0xff]
          %v852 = vld [vmem:[#allocation2 + $0x68] sm:$0xff]
          %v853 = vld [vmem:[#allocation2 + $0x70] sm:$0xff]
          %v854 = vld [vmem:[#allocation2 + $0x78] sm:$0xff]
          %v855 = vld [vmem:[#allocation9] sm:$0xff]
          %v856 = vld [vmem:[#allocation9 + $0x8] sm:$0xff]
          %v857 = vld [vmem:[#allocation9 + $0x10] sm:$0xff]
          %v858 = vld [vmem:[#allocation9 + $0x18] sm:$0xff]
          %v859 = vld [vmem:[#allocation9 + $0x20] sm:$0xff]
          %v860 = vld [vmem:[#allocation9 + $0x28] sm:$0xff]
          %v861 = vld [vmem:[#allocation9 + $0x30] sm:$0xff]
          %v862 = vld [vmem:[#allocation9 + $0x38] sm:$0xff]
          %v863 = vld [vmem:[#allocation9 + $0x40] sm:$0xff]
          %v864 = vld [vmem:[#allocation9 + $0x48] sm:$0xff]
          %v865 = vld [vmem:[#allocation9 + $0x50] sm:$0xff]
          %v866 = vld [vmem:[#allocation9 + $0x58] sm:$0xff]
          %v867 = vld [vmem:[#allocation9 + $0x60] sm:$0xff]
          %v868 = vld [vmem:[#allocation9 + $0x68] sm:$0xff]
          %v869 = vld [vmem:[#allocation9 + $0x70] sm:$0xff]
          %v870 = vld [vmem:[#allocation9 + $0x78] sm:$0xff]
          %v871 = vld [vmem:[#allocation11] sm:$0xff]
          %v872 = vld [vmem:[#allocation11 + $0x8] sm:$0xff]
          %v873 = vld [vmem:[#allocation11 + $0x10] sm:$0xff]
          %v874 = vld [vmem:[#allocation11 + $0x18] sm:$0xff]
          %v875 = vld [vmem:[#allocation11 + $0x20] sm:$0xff]
          %v876 = vld [vmem:[#allocation11 + $0x28] sm:$0xff]
          %v877 = vld [vmem:[#allocation11 + $0x30] sm:$0xff]
          %v878 = vld [vmem:[#allocation11 + $0x38] sm:$0xff]
          %v879 = vld [vmem:[#allocation11 + $0x40] sm:$0xff]
          %v880 = vld [vmem:[#allocation11 + $0x48] sm:$0xff]
          %v881 = vld [vmem:[#allocation11 + $0x50] sm:$0xff]
          %v882 = vld [vmem:[#allocation11 + $0x58] sm:$0xff]
          %v883 = vld [vmem:[#allocation11 + $0x60] sm:$0xff]
          %v884 = vld [vmem:[#allocation11 + $0x68] sm:$0xff]
          %v885 = vld [vmem:[#allocation11 + $0x70] sm:$0xff]
          %v886 = vld [vmem:[#allocation11 + $0x78] sm:$0xff]
          %887 = vmatprep.subr.mxu0 0.0
          %888 = vmatpush1.msra.mxu0 %v871
          %889 = vmatprep.subr.mxu0 0.0
          %890 = vmatpush1.msra.mxu0 %v872
          %891 = vmatprep.subr.mxu0 0.0
          %892 = vmatpush1.msra.mxu0 %v873
          %893 = vmatprep.subr.mxu0 0.0
          %894 = vmatpush1.msra.mxu0 %v874
          %895 = vmatprep.subr.mxu0 0.0
          %896 = vmatpush1.msra.mxu0 %v875
          %897 = vmatprep.subr.mxu0 0.0
          %898 = vmatpush1.msra.mxu0 %v876
          %899 = vmatprep.subr.mxu0 0.0
          %900 = vmatpush1.msra.mxu0 %v877
          %901 = vmatprep.subr.mxu0 0.0
          %902 = vmatpush1.msra.mxu0 %v878
          %903 = vmatprep.subr.mxu0 0.0
          %904 = vmatpush1.msra.mxu0 %v879
          %905 = vmatprep.subr.mxu0 0.0
          %906 = vmatpush1.msra.mxu0 %v880
          %907 = vmatprep.subr.mxu0 0.0
          %908 = vmatpush1.msra.mxu0 %v881
          %909 = vmatprep.subr.mxu0 0.0
          %910 = vmatpush1.msra.mxu0 %v882
          %911 = vmatprep.subr.mxu0 0.0
          %912 = vmatpush1.msra.mxu0 %v883
          %913 = vmatprep.subr.mxu0 0.0
          %914 = vmatpush1.msra.mxu0 %v884
          %915 = vmatprep.subr.mxu0 0.0
          %916 = vmatpush1.msra.mxu0 %v885
          %917 = vmatprep.subr.mxu0 0.0
          %918 = vmatpush1.msra.mxu0 %v886
          %919 = vmatprep.subr.mxu0 0.0
          %920 = vmatpush1.msra.mxu0 0.0
          %921 = vmatprep.subr.mxu0 0.0
          %922 = vmatpush1.msra.mxu0 0.0
          %923 = vmatprep.subr.mxu0 0.0
          %924 = vmatpush1.msra.mxu0 0.0
          %925 = vmatprep.subr.mxu0 0.0
          %926 = vmatpush1.msra.mxu0 0.0
          %927 = vmatprep.subr.mxu0 0.0
          %928 = vmatpush1.msra.mxu0 0.0
          %929 = vmatprep.subr.mxu0 0.0
          %930 = vmatpush1.msra.mxu0 0.0
          %931 = vmatprep.subr.mxu0 0.0
          %932 = vmatpush1.msra.mxu0 0.0
          %933 = vmatprep.subr.mxu0 0.0
          %934 = vmatpush1.msra.mxu0 0.0
          %935 = vmatprep.subr.mxu0 0.0
          %936 = vmatpush1.msra.mxu0 0.0
          %937 = vmatprep.subr.mxu0 0.0
          %938 = vmatpush1.msra.mxu0 0.0
          %939 = vmatprep.subr.mxu0 0.0
          %940 = vmatpush1.msra.mxu0 0.0
          %941 = vmatprep.subr.mxu0 0.0
          %942 = vmatpush1.msra.mxu0 0.0
          %943 = vmatprep.subr.mxu0 0.0
          %944 = vmatpush1.msra.mxu0 0.0
          %945 = vmatprep.subr.mxu0 0.0
          %946 = vmatpush1.msra.mxu0 0.0
          %947 = vmatprep.subr.mxu0 0.0
          %948 = vmatpush1.msra.mxu0 0.0
          %949 = vmatprep.subr.mxu0 0.0
          %950 = vmatpush1.msra.mxu0 0.0
          %951 = vmatprep.mubr.f32.mxu0 0.0
          %952 = vmatmul.mubr.f32.gmra.mrb[0].mxu0 %v839
          %v953 = vpop.f32.mrb[0].mxu0
          %v954 = vadd.f32 0.0, %v953
          %v955 = vpop.f32.mrb[0].mxu0
          %956 = vmatprep.mubr.f32.mxu0 0.0
          %957 = vmatmul.mubr.f32.gmra.mrb[0].mxu0 %v840
          %v958 = vpop.f32.mrb[0].mxu0
          %v959 = vadd.f32 0.0, %v958
          %v960 = vpop.f32.mrb[0].mxu0
          %961 = vmatprep.mubr.f32.mxu0 0.0
          %962 = vmatmul.mubr.f32.gmra.mrb[0].mxu0 %v841
          %v963 = vpop.f32.mrb[0].mxu0
          %v964 = vadd.f32 0.0, %v963
          %v965 = vpop.f32.mrb[0].mxu0
          %966 = vmatprep.mubr.f32.mxu0 0.0
          %967 = vmatmul.mubr.f32.gmra.mrb[0].mxu0 %v842
          %v968 = vpop.f32.mrb[0].mxu0
          %v969 = vadd.f32 0.0, %v968
          %v970 = vpop.f32.mrb[0].mxu0
          %971 = vmatprep.mubr.f32.mxu0 0.0
          %972 = vmatmul.mubr.f32.gmra.mrb[0].mxu0 %v843
          %v973 = vpop.f32.mrb[0].mxu0
          %v974 = vadd.f32 0.0, %v973
          %v975 = vpop.f32.mrb[0].mxu0
          %976 = vmatprep.mubr.f32.mxu0 0.0
          %977 = vmatmul.mubr.f32.gmra.mrb[0].mxu0 %v844
          %v978 = vpop.f32.mrb[0].mxu0
          %v979 = vadd.f32 0.0, %v978
          %v980 = vpop.f32.mrb[0].mxu0
          %981 = vmatprep.mubr.f32.mxu0 0.0
          %982 = vmatmul.mubr.f32.gmra.mrb[0].mxu0 %v845
          %v983 = vpop.f32.mrb[0].mxu0
          %v984 = vadd.f32 0.0, %v983
          %v985 = vpop.f32.mrb[0].mxu0
          %986 = vmatprep.mubr.f32.mxu0 0.0
          %987 = vmatmul.mubr.f32.gmra.mrb[0].mxu0 %v846
          %v988 = vpop.f32.mrb[0].mxu0
          %v989 = vadd.f32 0.0, %v988
          %v990 = vpop.f32.mrb[0].mxu0
          %991 = vmatprep.mubr.f32.mxu0 0.0
          %992 = vmatmul.mubr.f32.gmra.mrb[0].mxu0 %v847
          %v993 = vpop.f32.mrb[0].mxu0
          %v994 = vadd.f32 0.0, %v993
          %v995 = vpop.f32.mrb[0].mxu0
          %996 = vmatprep.mubr.f32.mxu0 0.0
          %997 = vmatmul.mubr.f32.gmra.mrb[0].mxu0 %v848
          %v998 = vpop.f32.mrb[0].mxu0
          %v999 = vadd.f32 0.0, %v998
          %v1000 = vpop.f32.mrb[0].mxu0
          %1001 = vmatprep.mubr.f32.mxu0 0.0
          %1002 = vmatmul.mubr.f32.gmra.mrb[0].mxu0 %v849
          %v1003 = vpop.f32.mrb[0].mxu0
          %v1004 = vadd.f32 0.0, %v1003
          %v1005 = vpop.f32.mrb[0].mxu0
          %1006 = vmatprep.mubr.f32.mxu0 0.0
          %1007 = vmatmul.mubr.f32.gmra.mrb[0].mxu0 %v850
          %v1008 = vpop.f32.mrb[0].mxu0
          %v1009 = vadd.f32 0.0, %v1008
          %v1010 = vpop.f32.mrb[0].mxu0
          %1011 = vmatprep.mubr.f32.mxu0 0.0
          %1012 = vmatmul.mubr.f32.gmra.mrb[0].mxu0 %v851
          %v1013 = vpop.f32.mrb[0].mxu0
          %v1014 = vadd.f32 0.0, %v1013
          %v1015 = vpop.f32.mrb[0].mxu0
          %1016 = vmatprep.mubr.f32.mxu0 0.0
          %1017 = vmatmul.mubr.f32.gmra.mrb[0].mxu0 %v852
          %v1018 = vpop.f32.mrb[0].mxu0
          %v1019 = vadd.f32 0.0, %v1018
          %v1020 = vpop.f32.mrb[0].mxu0
          %1021 = vmatprep.mubr.f32.mxu0 0.0
          %1022 = vmatmul.mubr.f32.gmra.mrb[0].mxu0 %v853
          %v1023 = vpop.f32.mrb[0].mxu0
          %v1024 = vadd.f32 0.0, %v1023
          %v1025 = vpop.f32.mrb[0].mxu0
          %1026 = vmatprep.mubr.f32.mxu0 0.0
          %1027 = vmatmul.mubr.f32.gmra.mrb[0].mxu0 %v854
          %v1028 = vpop.f32.mrb[0].mxu0
          %v1029 = vadd.f32 0.0, %v1028
          %v1030 = vpop.f32.mrb[0].mxu0
          %1031 = vdwg.mxu0
          %1032 = vmatprep.subr.mxu0 0.0
          %1033 = vmatpush1.msra.mxu0 %v855
          %1034 = vmatprep.subr.mxu0 0.0
          %1035 = vmatpush1.msra.mxu0 %v856
          %1036 = vmatprep.subr.mxu0 0.0
          %1037 = vmatpush1.msra.mxu0 %v857
          %1038 = vmatprep.subr.mxu0 0.0
          %1039 = vmatpush1.msra.mxu0 %v858
          %1040 = vmatprep.subr.mxu0 0.0
          %1041 = vmatpush1.msra.mxu0 %v859
          %1042 = vmatprep.subr.mxu0 0.0
          %1043 = vmatpush1.msra.mxu0 %v860
          %1044 = vmatprep.subr.mxu0 0.0
          %1045 = vmatpush1.msra.mxu0 %v861
          %1046 = vmatprep.subr.mxu0 0.0
          %1047 = vmatpush1.msra.mxu0 %v862
          %1048 = vmatprep.subr.mxu0 0.0
          %1049 = vmatpush1.msra.mxu0 %v863
          %1050 = vmatprep.subr.mxu0 0.0
          %1051 = vmatpush1.msra.mxu0 %v864
          %1052 = vmatprep.subr.mxu0 0.0
          %1053 = vmatpush1.msra.mxu0 %v865
          %1054 = vmatprep.subr.mxu0 0.0
          %1055 = vmatpush1.msra.mxu0 %v866
          %1056 = vmatprep.subr.mxu0 0.0
          %1057 = vmatpush1.msra.mxu0 %v867
          %1058 = vmatprep.subr.mxu0 0.0
          %1059 = vmatpush1.msra.mxu0 %v868
          %1060 = vmatprep.subr.mxu0 0.0
          %1061 = vmatpush1.msra.mxu0 %v869
          %1062 = vmatprep.subr.mxu0 0.0
          %1063 = vmatpush1.msra.mxu0 %v870
          %1064 = vmatprep.subr.mxu0 0.0
          %1065 = vmatpush1.msra.mxu0 0.0
          %1066 = vmatprep.subr.mxu0 0.0
          %1067 = vmatpush1.msra.mxu0 0.0
          %1068 = vmatprep.subr.mxu0 0.0
          %1069 = vmatpush1.msra.mxu0 0.0
          %1070 = vmatprep.subr.mxu0 0.0
          %1071 = vmatpush1.msra.mxu0 0.0
          %1072 = vmatprep.subr.mxu0 0.0
          %1073 = vmatpush1.msra.mxu0 0.0
          %1074 = vmatprep.subr.mxu0 0.0
          %1075 = vmatpush1.msra.mxu0 0.0
          %1076 = vmatprep.subr.mxu0 0.0
          %1077 = vmatpush1.msra.mxu0 0.0
          %1078 = vmatprep.subr.mxu0 0.0
          %1079 = vmatpush1.msra.mxu0 0.0
          %1080 = vmatprep.subr.mxu0 0.0
          %1081 = vmatpush1.msra.mxu0 0.0
          %1082 = vmatprep.subr.mxu0 0.0
          %1083 = vmatpush1.msra.mxu0 0.0
          %1084 = vmatprep.subr.mxu0 0.0
          %1085 = vmatpush1.msra.mxu0 0.0
          %1086 = vmatprep.subr.mxu0 0.0
          %1087 = vmatpush1.msra.mxu0 0.0
          %1088 = vmatprep.subr.mxu0 0.0
          %1089 = vmatpush1.msra.mxu0 0.0
          %1090 = vmatprep.subr.mxu0 0.0
          %1091 = vmatpush1.msra.mxu0 0.0
          %1092 = vmatprep.subr.mxu0 0.0
          %1093 = vmatpush1.msra.mxu0 0.0
          %1094 = vmatprep.subr.mxu0 0.0
          %1095 = vmatpush1.msra.mxu0 0.0
          %1096 = vmatprep.mubr.f32.mxu0 0.0
          %1097 = vmatmul.mubr.f32.gmra.mrb[0].mxu0 %v823
          %v1098 = vpop.f32.mrb[0].mxu0
          %v1099 = vadd.f32 %v954, %v1098
          %v1100 = vpop.f32.mrb[0].mxu0
          %1101 = vmatprep.mubr.f32.mxu0 0.0
          %1102 = vmatmul.mubr.f32.gmra.mrb[0].mxu0 %v824
          %v1103 = vpop.f32.mrb[0].mxu0
          %v1104 = vadd.f32 %v959, %v1103
          %v1105 = vpop.f32.mrb[0].mxu0
          %1106 = vmatprep.mubr.f32.mxu0 0.0
          %1107 = vmatmul.mubr.f32.gmra.mrb[0].mxu0 %v825
          %v1108 = vpop.f32.mrb[0].mxu0
          %v1109 = vadd.f32 %v964, %v1108
          %v1110 = vpop.f32.mrb[0].mxu0
          %1111 = vmatprep.mubr.f32.mxu0 0.0
          %1112 = vmatmul.mubr.f32.gmra.mrb[0].mxu0 %v826
          %v1113 = vpop.f32.mrb[0].mxu0
          %v1114 = vadd.f32 %v969, %v1113
          %v1115 = vpop.f32.mrb[0].mxu0
          %1116 = vmatprep.mubr.f32.mxu0 0.0
          %1117 = vmatmul.mubr.f32.gmra.mrb[0].mxu0 %v827
          %v1118 = vpop.f32.mrb[0].mxu0
          %v1119 = vadd.f32 %v974, %v1118
          %v1120 = vpop.f32.mrb[0].mxu0
          %1121 = vmatprep.mubr.f32.mxu0 0.0
          %1122 = vmatmul.mubr.f32.gmra.mrb[0].mxu0 %v828
          %v1123 = vpop.f32.mrb[0].mxu0
          %v1124 = vadd.f32 %v979, %v1123
          %v1125 = vpop.f32.mrb[0].mxu0
          %1126 = vmatprep.mubr.f32.mxu0 0.0
          %1127 = vmatmul.mubr.f32.gmra.mrb[0].mxu0 %v829
          %v1128 = vpop.f32.mrb[0].mxu0
          %v1129 = vadd.f32 %v984, %v1128
          %v1130 = vpop.f32.mrb[0].mxu0
          %1131 = vmatprep.mubr.f32.mxu0 0.0
          %1132 = vmatmul.mubr.f32.gmra.mrb[0].mxu0 %v830
          %v1133 = vpop.f32.mrb[0].mxu0
          %v1134 = vadd.f32 %v989, %v1133
          %v1135 = vpop.f32.mrb[0].mxu0
          %1136 = vmatprep.mubr.f32.mxu0 0.0
          %1137 = vmatmul.mubr.f32.gmra.mrb[0].mxu0 %v831
          %v1138 = vpop.f32.mrb[0].mxu0
          %v1139 = vadd.f32 %v994, %v1138
          %v1140 = vpop.f32.mrb[0].mxu0
          %1141 = vmatprep.mubr.f32.mxu0 0.0
          %1142 = vmatmul.mubr.f32.gmra.mrb[0].mxu0 %v832
          %v1143 = vpop.f32.mrb[0].mxu0
          %v1144 = vadd.f32 %v999, %v1143
          %v1145 = vpop.f32.mrb[0].mxu0
          %1146 = vmatprep.mubr.f32.mxu0 0.0
          %1147 = vmatmul.mubr.f32.gmra.mrb[0].mxu0 %v833
          %v1148 = vpop.f32.mrb[0].mxu0
          %v1149 = vadd.f32 %v1004, %v1148
          %v1150 = vpop.f32.mrb[0].mxu0
          %1151 = vmatprep.mubr.f32.mxu0 0.0
          %1152 = vmatmul.mubr.f32.gmra.mrb[0].mxu0 %v834
          %v1153 = vpop.f32.mrb[0].mxu0
          %v1154 = vadd.f32 %v1009, %v1153
          %v1155 = vpop.f32.mrb[0].mxu0
          %1156 = vmatprep.mubr.f32.mxu0 0.0
          %1157 = vmatmul.mubr.f32.gmra.mrb[0].mxu0 %v835
          %v1158 = vpop.f32.mrb[0].mxu0
          %v1159 = vadd.f32 %v1014, %v1158
          %v1160 = vpop.f32.mrb[0].mxu0
          %1161 = vmatprep.mubr.f32.mxu0 0.0
          %1162 = vmatmul.mubr.f32.gmra.mrb[0].mxu0 %v836
          %v1163 = vpop.f32.mrb[0].mxu0
          %v1164 = vadd.f32 %v1019, %v1163
          %v1165 = vpop.f32.mrb[0].mxu0
          %1166 = vmatprep.mubr.f32.mxu0 0.0
          %1167 = vmatmul.mubr.f32.gmra.mrb[0].mxu0 %v837
          %v1168 = vpop.f32.mrb[0].mxu0
          %v1169 = vadd.f32 %v1024, %v1168
          %v1170 = vpop.f32.mrb[0].mxu0
          %1171 = vmatprep.mubr.f32.mxu0 0.0
          %1172 = vmatmul.mubr.f32.gmra.mrb[0].mxu0 %v838
          %v1173 = vpop.f32.mrb[0].mxu0
          %v1174 = vadd.f32 %v1029, %v1173
          %v1175 = vpop.f32.mrb[0].mxu0
          %1176 = vdwg.mxu0
          %v1177 = vld [vmem:[%s5] sm:$0x1]
          %v1179 = vlaneseq
          %v1180 = vshrl.u32 %v1179, 7
          %v1181 = vsub.s32 0, %v1180
          %v1182 = vrot.slane %v1177, %v1181
          %v1184 = vadd.f32 %v1099, %v1182
          %v1185 = vadd.f32 %v1104, %v1182
          %v1186 = vadd.f32 %v1109, %v1182
          %v1187 = vadd.f32 %v1114, %v1182
          %v1188 = vadd.f32 %v1119, %v1182
          %v1189 = vadd.f32 %v1124, %v1182
          %v1190 = vadd.f32 %v1129, %v1182
          %v1191 = vadd.f32 %v1134, %v1182
          %v1192 = vadd.f32 %v1139, %v1182
          %v1193 = vadd.f32 %v1144, %v1182
          %v1194 = vadd.f32 %v1149, %v1182
          %v1195 = vadd.f32 %v1154, %v1182
          %v1196 = vadd.f32 %v1159, %v1182
          %v1197 = vadd.f32 %v1164, %v1182
          %v1198 = vadd.f32 %v1169, %v1182
          %v1199 = vadd.f32 %v1174, %v1182
          %v1200 = vld [vmem:[#allocation12] sm:$0xff]
          %v1201 = vld [vmem:[#allocation12 + $0x8] sm:$0xff]
          %v1202 = vld [vmem:[#allocation12 + $0x10] sm:$0xff]
          %v1203 = vld [vmem:[#allocation12 + $0x18] sm:$0xff]
          %v1204 = vld [vmem:[#allocation12 + $0x20] sm:$0xff]
          %v1205 = vld [vmem:[#allocation12 + $0x28] sm:$0xff]
          %v1206 = vld [vmem:[#allocation12 + $0x30] sm:$0xff]
          %v1207 = vld [vmem:[#allocation12 + $0x38] sm:$0xff]
          %v1208 = vld [vmem:[#allocation12 + $0x40] sm:$0xff]
          %v1209 = vld [vmem:[#allocation12 + $0x48] sm:$0xff]
          %v1210 = vld [vmem:[#allocation12 + $0x50] sm:$0xff]
          %v1211 = vld [vmem:[#allocation12 + $0x58] sm:$0xff]
          %v1212 = vld [vmem:[#allocation12 + $0x60] sm:$0xff]
          %v1213 = vld [vmem:[#allocation12 + $0x68] sm:$0xff]
          %v1214 = vld [vmem:[#allocation12 + $0x70] sm:$0xff]
          %v1215 = vld [vmem:[#allocation12 + $0x78] sm:$0xff]
          %v1216 = vld [vmem:[#allocation14] sm:$0xff]
          %v1217 = vld [vmem:[#allocation14 + $0x8] sm:$0xff]
          %v1218 = vld [vmem:[#allocation14 + $0x10] sm:$0xff]
          %v1219 = vld [vmem:[#allocation14 + $0x18] sm:$0xff]
          %v1220 = vld [vmem:[#allocation14 + $0x20] sm:$0xff]
          %v1221 = vld [vmem:[#allocation14 + $0x28] sm:$0xff]
          %v1222 = vld [vmem:[#allocation14 + $0x30] sm:$0xff]
          %v1223 = vld [vmem:[#allocation14 + $0x38] sm:$0xff]
          %v1224 = vld [vmem:[#allocation14 + $0x40] sm:$0xff]
          %v1225 = vld [vmem:[#allocation14 + $0x48] sm:$0xff]
          %v1226 = vld [vmem:[#allocation14 + $0x50] sm:$0xff]
          %v1227 = vld [vmem:[#allocation14 + $0x58] sm:$0xff]
          %v1228 = vld [vmem:[#allocation14 + $0x60] sm:$0xff]
          %v1229 = vld [vmem:[#allocation14 + $0x68] sm:$0xff]
          %v1230 = vld [vmem:[#allocation14 + $0x70] sm:$0xff]
          %v1231 = vld [vmem:[#allocation14 + $0x78] sm:$0xff]
          %1232 = vmatprep.subr.mxu0 0.0
          %1233 = vmatpush1.msra.mxu0 %v1216
          %1234 = vmatprep.subr.mxu0 0.0
          %1235 = vmatpush1.msra.mxu0 %v1217
          %1236 = vmatprep.subr.mxu0 0.0
          %1237 = vmatpush1.msra.mxu0 %v1218
          %1238 = vmatprep.subr.mxu0 0.0
          %1239 = vmatpush1.msra.mxu0 %v1219
          %1240 = vmatprep.subr.mxu0 0.0
          %1241 = vmatpush1.msra.mxu0 %v1220
          %1242 = vmatprep.subr.mxu0 0.0
          %1243 = vmatpush1.msra.mxu0 %v1221
          %1244 = vmatprep.subr.mxu0 0.0
          %1245 = vmatpush1.msra.mxu0 %v1222
          %1246 = vmatprep.subr.mxu0 0.0
          %1247 = vmatpush1.msra.mxu0 %v1223
          %1248 = vmatprep.subr.mxu0 0.0
          %1249 = vmatpush1.msra.mxu0 %v1224
          %1250 = vmatprep.subr.mxu0 0.0
          %1251 = vmatpush1.msra.mxu0 %v1225
          %1252 = vmatprep.subr.mxu0 0.0
          %1253 = vmatpush1.msra.mxu0 %v1226
          %1254 = vmatprep.subr.mxu0 0.0
          %1255 = vmatpush1.msra.mxu0 %v1227
          %1256 = vmatprep.subr.mxu0 0.0
          %1257 = vmatpush1.msra.mxu0 %v1228
          %1258 = vmatprep.subr.mxu0 0.0
          %1259 = vmatpush1.msra.mxu0 %v1229
          %1260 = vmatprep.subr.mxu0 0.0
          %1261 = vmatpush1.msra.mxu0 %v1230
          %1262 = vmatprep.subr.mxu0 0.0
          %1263 = vmatpush1.msra.mxu0 %v1231
          %1264 = vmatprep.subr.mxu0 0.0
          %1265 = vmatpush1.msra.mxu0 0.0
          %1266 = vmatprep.subr.mxu0 0.0
          %1267 = vmatpush1.msra.mxu0 0.0
          %1268 = vmatprep.subr.mxu0 0.0
          %1269 = vmatpush1.msra.mxu0 0.0
          %1270 = vmatprep.subr.mxu0 0.0
          %1271 = vmatpush1.msra.mxu0 0.0
          %1272 = vmatprep.subr.mxu0 0.0
          %1273 = vmatpush1.msra.mxu0 0.0
          %1274 = vmatprep.subr.mxu0 0.0
          %1275 = vmatpush1.msra.mxu0 0.0
          %1276 = vmatprep.subr.mxu0 0.0
          %1277 = vmatpush1.msra.mxu0 0.0
          %1278 = vmatprep.subr.mxu0 0.0
          %1279 = vmatpush1.msra.mxu0 0.0
          %1280 = vmatprep.subr.mxu0 0.0
          %1281 = vmatpush1.msra.mxu0 0.0
          %1282 = vmatprep.subr.mxu0 0.0
          %1283 = vmatpush1.msra.mxu0 0.0
          %1284 = vmatprep.subr.mxu0 0.0
          %1285 = vmatpush1.msra.mxu0 0.0
          %1286 = vmatprep.subr.mxu0 0.0
          %1287 = vmatpush1.msra.mxu0 0.0
          %1288 = vmatprep.subr.mxu0 0.0
          %1289 = vmatpush1.msra.mxu0 0.0
          %1290 = vmatprep.subr.mxu0 0.0
          %1291 = vmatpush1.msra.mxu0 0.0
          %1292 = vmatprep.subr.mxu0 0.0
          %1293 = vmatpush1.msra.mxu0 0.0
          %1294 = vmatprep.subr.mxu0 0.0
          %1295 = vmatpush1.msra.mxu0 0.0
          %1296 = vmatprep.mubr.f32.mxu0 0.0
          %1297 = vmatmul.mubr.f32.gmra.mrb[0].mxu0 %v823
          %v1298 = vpop.f32.mrb[0].mxu0
          %v1299 = vadd.f32 0.0, %v1298
          %v1300 = vpop.f32.mrb[0].mxu0
          %1301 = vmatprep.mubr.f32.mxu0 0.0
          %1302 = vmatmul.mubr.f32.gmra.mrb[0].mxu0 %v824
          %v1303 = vpop.f32.mrb[0].mxu0
          %v1304 = vadd.f32 0.0, %v1303
          %v1305 = vpop.f32.mrb[0].mxu0
          %1306 = vmatprep.mubr.f32.mxu0 0.0
          %1307 = vmatmul.mubr.f32.gmra.mrb[0].mxu0 %v825
          %v1308 = vpop.f32.mrb[0].mxu0
          %v1309 = vadd.f32 0.0, %v1308
          %v1310 = vpop.f32.mrb[0].mxu0
          %1311 = vmatprep.mubr.f32.mxu0 0.0
          %1312 = vmatmul.mubr.f32.gmra.mrb[0].mxu0 %v826
          %v1313 = vpop.f32.mrb[0].mxu0
          %v1314 = vadd.f32 0.0, %v1313
          %v1315 = vpop.f32.mrb[0].mxu0
          %1316 = vmatprep.mubr.f32.mxu0 0.0
          %1317 = vmatmul.mubr.f32.gmra.mrb[0].mxu0 %v827
          %v1318 = vpop.f32.mrb[0].mxu0
          %v1319 = vadd.f32 0.0, %v1318
          %v1320 = vpop.f32.mrb[0].mxu0
          %1321 = vmatprep.mubr.f32.mxu0 0.0
          %1322 = vmatmul.mubr.f32.gmra.mrb[0].mxu0 %v828
          %v1323 = vpop.f32.mrb[0].mxu0
          %v1324 = vadd.f32 0.0, %v1323
          %v1325 = vpop.f32.mrb[0].mxu0
          %1326 = vmatprep.mubr.f32.mxu0 0.0
          %1327 = vmatmul.mubr.f32.gmra.mrb[0].mxu0 %v829
          %v1328 = vpop.f32.mrb[0].mxu0
          %v1329 = vadd.f32 0.0, %v1328
          %v1330 = vpop.f32.mrb[0].mxu0
          %1331 = vmatprep.mubr.f32.mxu0 0.0
          %1332 = vmatmul.mubr.f32.gmra.mrb[0].mxu0 %v830
          %v1333 = vpop.f32.mrb[0].mxu0
          %v1334 = vadd.f32 0.0, %v1333
          %v1335 = vpop.f32.mrb[0].mxu0
          %1336 = vmatprep.mubr.f32.mxu0 0.0
          %1337 = vmatmul.mubr.f32.gmra.mrb[0].mxu0 %v831
          %v1338 = vpop.f32.mrb[0].mxu0
          %v1339 = vadd.f32 0.0, %v1338
          %v1340 = vpop.f32.mrb[0].mxu0
          %1341 = vmatprep.mubr.f32.mxu0 0.0
          %1342 = vmatmul.mubr.f32.gmra.mrb[0].mxu0 %v832
          %v1343 = vpop.f32.mrb[0].mxu0
          %v1344 = vadd.f32 0.0, %v1343
          %v1345 = vpop.f32.mrb[0].mxu0
          %1346 = vmatprep.mubr.f32.mxu0 0.0
          %1347 = vmatmul.mubr.f32.gmra.mrb[0].mxu0 %v833
          %v1348 = vpop.f32.mrb[0].mxu0
          %v1349 = vadd.f32 0.0, %v1348
          %v1350 = vpop.f32.mrb[0].mxu0
          %1351 = vmatprep.mubr.f32.mxu0 0.0
          %1352 = vmatmul.mubr.f32.gmra.mrb[0].mxu0 %v834
          %v1353 = vpop.f32.mrb[0].mxu0
          %v1354 = vadd.f32 0.0, %v1353
          %v1355 = vpop.f32.mrb[0].mxu0
          %1356 = vmatprep.mubr.f32.mxu0 0.0
          %1357 = vmatmul.mubr.f32.gmra.mrb[0].mxu0 %v835
          %v1358 = vpop.f32.mrb[0].mxu0
          %v1359 = vadd.f32 0.0, %v1358
          %v1360 = vpop.f32.mrb[0].mxu0
          %1361 = vmatprep.mubr.f32.mxu0 0.0
          %1362 = vmatmul.mubr.f32.gmra.mrb[0].mxu0 %v836
          %v1363 = vpop.f32.mrb[0].mxu0
          %v1364 = vadd.f32 0.0, %v1363
          %v1365 = vpop.f32.mrb[0].mxu0
          %1366 = vmatprep.mubr.f32.mxu0 0.0
          %1367 = vmatmul.mubr.f32.gmra.mrb[0].mxu0 %v837
          %v1368 = vpop.f32.mrb[0].mxu0
          %v1369 = vadd.f32 0.0, %v1368
          %v1370 = vpop.f32.mrb[0].mxu0
          %1371 = vmatprep.mubr.f32.mxu0 0.0
          %1372 = vmatmul.mubr.f32.gmra.mrb[0].mxu0 %v838
          %v1373 = vpop.f32.mrb[0].mxu0
          %v1374 = vadd.f32 0.0, %v1373
          %v1375 = vpop.f32.mrb[0].mxu0
          %1376 = vdwg.mxu0
          %1377 = vmatprep.subr.mxu0 0.0
          %1378 = vmatpush1.msra.mxu0 %v1200
          %1379 = vmatprep.subr.mxu0 0.0
          %1380 = vmatpush1.msra.mxu0 %v1201
          %1381 = vmatprep.subr.mxu0 0.0
          %1382 = vmatpush1.msra.mxu0 %v1202
          %1383 = vmatprep.subr.mxu0 0.0
          %1384 = vmatpush1.msra.mxu0 %v1203
          %1385 = vmatprep.subr.mxu0 0.0
          %1386 = vmatpush1.msra.mxu0 %v1204
          %1387 = vmatprep.subr.mxu0 0.0
          %1388 = vmatpush1.msra.mxu0 %v1205
          %1389 = vmatprep.subr.mxu0 0.0
          %1390 = vmatpush1.msra.mxu0 %v1206
          %1391 = vmatprep.subr.mxu0 0.0
          %1392 = vmatpush1.msra.mxu0 %v1207
          %1393 = vmatprep.subr.mxu0 0.0
          %1394 = vmatpush1.msra.mxu0 %v1208
          %1395 = vmatprep.subr.mxu0 0.0
          %1396 = vmatpush1.msra.mxu0 %v1209
          %1397 = vmatprep.subr.mxu0 0.0
          %1398 = vmatpush1.msra.mxu0 %v1210
          %1399 = vmatprep.subr.mxu0 0.0
          %1400 = vmatpush1.msra.mxu0 %v1211
          %1401 = vmatprep.subr.mxu0 0.0
          %1402 = vmatpush1.msra.mxu0 %v1212
          %1403 = vmatprep.subr.mxu0 0.0
          %1404 = vmatpush1.msra.mxu0 %v1213
          %1405 = vmatprep.subr.mxu0 0.0
          %1406 = vmatpush1.msra.mxu0 %v1214
          %1407 = vmatprep.subr.mxu0 0.0
          %1408 = vmatpush1.msra.mxu0 %v1215
          %1409 = vmatprep.subr.mxu0 0.0
          %1410 = vmatpush1.msra.mxu0 0.0
          %1411 = vmatprep.subr.mxu0 0.0
          %1412 = vmatpush1.msra.mxu0 0.0
          %1413 = vmatprep.subr.mxu0 0.0
          %1414 = vmatpush1.msra.mxu0 0.0
          %1415 = vmatprep.subr.mxu0 0.0
          %1416 = vmatpush1.msra.mxu0 0.0
          %1417 = vmatprep.subr.mxu0 0.0
          %1418 = vmatpush1.msra.mxu0 0.0
          %1419 = vmatprep.subr.mxu0 0.0
          %1420 = vmatpush1.msra.mxu0 0.0
          %1421 = vmatprep.subr.mxu0 0.0
          %1422 = vmatpush1.msra.mxu0 0.0
          %1423 = vmatprep.subr.mxu0 0.0
          %1424 = vmatpush1.msra.mxu0 0.0
          %1425 = vmatprep.subr.mxu0 0.0
          %1426 = vmatpush1.msra.mxu0 0.0
          %1427 = vmatprep.subr.mxu0 0.0
          %1428 = vmatpush1.msra.mxu0 0.0
          %1429 = vmatprep.subr.mxu0 0.0
          %1430 = vmatpush1.msra.mxu0 0.0
          %1431 = vmatprep.subr.mxu0 0.0
          %1432 = vmatpush1.msra.mxu0 0.0
          %1433 = vmatprep.subr.mxu0 0.0
          %1434 = vmatpush1.msra.mxu0 0.0
          %1435 = vmatprep.subr.mxu0 0.0
          %1436 = vmatpush1.msra.mxu0 0.0
          %1437 = vmatprep.subr.mxu0 0.0
          %1438 = vmatpush1.msra.mxu0 0.0
          %1439 = vmatprep.subr.mxu0 0.0
          %1440 = vmatpush1.msra.mxu0 0.0
          %1441 = vmatprep.mubr.f32.mxu0 0.0
          %1442 = vmatmul.mubr.f32.gmra.mrb[0].mxu0 %v1184
          %v1443 = vpop.f32.mrb[0].mxu0
          %v1444 = vadd.f32 %v1299, %v1443
          %v1445 = vpop.f32.mrb[0].mxu0
          %1446 = vmatprep.mubr.f32.mxu0 0.0
          %1447 = vmatmul.mubr.f32.gmra.mrb[0].mxu0 %v1185
          %v1448 = vpop.f32.mrb[0].mxu0
          %v1449 = vadd.f32 %v1304, %v1448
          %v1450 = vpop.f32.mrb[0].mxu0
          %1451 = vmatprep.mubr.f32.mxu0 0.0
          %1452 = vmatmul.mubr.f32.gmra.mrb[0].mxu0 %v1186
          %v1453 = vpop.f32.mrb[0].mxu0
          %v1454 = vadd.f32 %v1309, %v1453
          %v1455 = vpop.f32.mrb[0].mxu0
          %1456 = vmatprep.mubr.f32.mxu0 0.0
          %1457 = vmatmul.mubr.f32.gmra.mrb[0].mxu0 %v1187
          %v1458 = vpop.f32.mrb[0].mxu0
          %v1459 = vadd.f32 %v1314, %v1458
          %v1460 = vpop.f32.mrb[0].mxu0
          %1461 = vmatprep.mubr.f32.mxu0 0.0
          %1462 = vmatmul.mubr.f32.gmra.mrb[0].mxu0 %v1188
          %v1463 = vpop.f32.mrb[0].mxu0
          %v1464 = vadd.f32 %v1319, %v1463
          %v1465 = vpop.f32.mrb[0].mxu0
          %1466 = vmatprep.mubr.f32.mxu0 0.0
          %1467 = vmatmul.mubr.f32.gmra.mrb[0].mxu0 %v1189
          %v1468 = vpop.f32.mrb[0].mxu0
          %v1469 = vadd.f32 %v1324, %v1468
          %v1470 = vpop.f32.mrb[0].mxu0
          %1471 = vmatprep.mubr.f32.mxu0 0.0
          %1472 = vmatmul.mubr.f32.gmra.mrb[0].mxu0 %v1190
          %v1473 = vpop.f32.mrb[0].mxu0
          %v1474 = vadd.f32 %v1329, %v1473
          %v1475 = vpop.f32.mrb[0].mxu0
          %1476 = vmatprep.mubr.f32.mxu0 0.0
          %1477 = vmatmul.mubr.f32.gmra.mrb[0].mxu0 %v1191
          %v1478 = vpop.f32.mrb[0].mxu0
          %v1479 = vadd.f32 %v1334, %v1478
          %v1480 = vpop.f32.mrb[0].mxu0
          %1481 = vmatprep.mubr.f32.mxu0 0.0
          %1482 = vmatmul.mubr.f32.gmra.mrb[0].mxu0 %v1192
          %v1483 = vpop.f32.mrb[0].mxu0
          %v1484 = vadd.f32 %v1339, %v1483
          %v1485 = vpop.f32.mrb[0].mxu0
          %1486 = vmatprep.mubr.f32.mxu0 0.0
          %1487 = vmatmul.mubr.f32.gmra.mrb[0].mxu0 %v1193
          %v1488 = vpop.f32.mrb[0].mxu0
          %v1489 = vadd.f32 %v1344, %v1488
          %v1490 = vpop.f32.mrb[0].mxu0
          %1491 = vmatprep.mubr.f32.mxu0 0.0
          %1492 = vmatmul.mubr.f32.gmra.mrb[0].mxu0 %v1194
          %v1493 = vpop.f32.mrb[0].mxu0
          %v1494 = vadd.f32 %v1349, %v1493
          %v1495 = vpop.f32.mrb[0].mxu0
          %1496 = vmatprep.mubr.f32.mxu0 0.0
          %1497 = vmatmul.mubr.f32.gmra.mrb[0].mxu0 %v1195
          %v1498 = vpop.f32.mrb[0].mxu0
          %v1499 = vadd.f32 %v1354, %v1498
          %v1500 = vpop.f32.mrb[0].mxu0
          %1501 = vmatprep.mubr.f32.mxu0 0.0
          %1502 = vmatmul.mubr.f32.gmra.mrb[0].mxu0 %v1196
          %v1503 = vpop.f32.mrb[0].mxu0
          %v1504 = vadd.f32 %v1359, %v1503
          %v1505 = vpop.f32.mrb[0].mxu0
          %1506 = vmatprep.mubr.f32.mxu0 0.0
          %1507 = vmatmul.mubr.f32.gmra.mrb[0].mxu0 %v1197
          %v1508 = vpop.f32.mrb[0].mxu0
          %v1509 = vadd.f32 %v1364, %v1508
          %v1510 = vpop.f32.mrb[0].mxu0
          %1511 = vmatprep.mubr.f32.mxu0 0.0
          %1512 = vmatmul.mubr.f32.gmra.mrb[0].mxu0 %v1198
          %v1513 = vpop.f32.mrb[0].mxu0
          %v1514 = vadd.f32 %v1369, %v1513
          %v1515 = vpop.f32.mrb[0].mxu0
          %1516 = vmatprep.mubr.f32.mxu0 0.0
          %1517 = vmatmul.mubr.f32.gmra.mrb[0].mxu0 %v1199
          %v1518 = vpop.f32.mrb[0].mxu0
          %v1519 = vadd.f32 %v1374, %v1518
          %v1520 = vpop.f32.mrb[0].mxu0
          %1521 = vdwg.mxu0
          %v1522 = vld [vmem:[%s8] sm:$0x1]
          %v1524 = vlaneseq
          %v1525 = vshrl.u32 %v1524, 7
          %v1526 = vsub.s32 0, %v1525
          %v1527 = vrot.slane %v1522, %v1526
          %v1529 = vadd.f32 %v1444, %v1527
          %v1530 = vadd.f32 %v1449, %v1527
          %v1531 = vadd.f32 %v1454, %v1527
          %v1532 = vadd.f32 %v1459, %v1527
          %v1533 = vadd.f32 %v1464, %v1527
          %v1534 = vadd.f32 %v1469, %v1527
          %v1535 = vadd.f32 %v1474, %v1527
          %v1536 = vadd.f32 %v1479, %v1527
          %v1537 = vadd.f32 %v1484, %v1527
          %v1538 = vadd.f32 %v1489, %v1527
          %v1539 = vadd.f32 %v1494, %v1527
          %v1540 = vadd.f32 %v1499, %v1527
          %v1541 = vadd.f32 %v1504, %v1527
          %v1542 = vadd.f32 %v1509, %v1527
          %v1543 = vadd.f32 %v1514, %v1527
          %v1544 = vadd.f32 %v1519, %v1527
          %v1545 = vxor.u32 %v1529, 2147483648
          %v1546 = vxor.u32 %v1530, 2147483648
          %v1547 = vxor.u32 %v1531, 2147483648
          %v1548 = vxor.u32 %v1532, 2147483648
          %v1549 = vxor.u32 %v1533, 2147483648
          %v1550 = vxor.u32 %v1534, 2147483648
          %v1551 = vxor.u32 %v1535, 2147483648
          %v1552 = vxor.u32 %v1536, 2147483648
          %v1553 = vxor.u32 %v1537, 2147483648
          %v1554 = vxor.u32 %v1538, 2147483648
          %v1555 = vxor.u32 %v1539, 2147483648
          %v1556 = vxor.u32 %v1540, 2147483648
          %v1557 = vxor.u32 %v1541, 2147483648
          %v1558 = vxor.u32 %v1542, 2147483648
          %v1559 = vxor.u32 %v1543, 2147483648
          %v1560 = vxor.u32 %v1544, 2147483648
          %v1561 = vmul.f32 %v1545, 1.442695
          %v1562 = vpow.pop %v1561
          %v1563 = vmul.f32 %v1546, 1.442695
          %v1564 = vpow.pop %v1563
          %v1565 = vmul.f32 %v1547, 1.442695
          %v1566 = vpow.pop %v1565
          %v1567 = vmul.f32 %v1548, 1.442695
          %v1568 = vpow.pop %v1567
          %v1569 = vmul.f32 %v1549, 1.442695
          %v1570 = vpow.pop %v1569
          %v1571 = vmul.f32 %v1550, 1.442695
          %v1572 = vpow.pop %v1571
          %v1573 = vmul.f32 %v1551, 1.442695
          %v1574 = vpow.pop %v1573
          %v1575 = vmul.f32 %v1552, 1.442695
          %v1576 = vpow.pop %v1575
          %v1577 = vmul.f32 %v1553, 1.442695
          %v1578 = vpow.pop %v1577
          %v1579 = vmul.f32 %v1554, 1.442695
          %v1580 = vpow.pop %v1579
          %v1581 = vmul.f32 %v1555, 1.442695
          %v1582 = vpow.pop %v1581
          %v1583 = vmul.f32 %v1556, 1.442695
          %v1584 = vpow.pop %v1583
          %v1585 = vmul.f32 %v1557, 1.442695
          %v1586 = vpow.pop %v1585
          %v1587 = vmul.f32 %v1558, 1.442695
          %v1588 = vpow.pop %v1587
          %v1589 = vmul.f32 %v1559, 1.442695
          %v1590 = vpow.pop %v1589
          %v1591 = vmul.f32 %v1560, 1.442695
          %v1592 = vpow.pop %v1591
          %v1593 = vadd.f32 %v1562, 1.0
          %v1594 = vadd.f32 %v1564, 1.0
          %v1595 = vadd.f32 %v1566, 1.0
          %v1596 = vadd.f32 %v1568, 1.0
          %v1597 = vadd.f32 %v1570, 1.0
          %v1598 = vadd.f32 %v1572, 1.0
          %v1599 = vadd.f32 %v1574, 1.0
          %v1600 = vadd.f32 %v1576, 1.0
          %v1601 = vadd.f32 %v1578, 1.0
          %v1602 = vadd.f32 %v1580, 1.0
          %v1603 = vadd.f32 %v1582, 1.0
          %v1604 = vadd.f32 %v1584, 1.0
          %v1605 = vadd.f32 %v1586, 1.0
          %v1606 = vadd.f32 %v1588, 1.0
          %v1607 = vadd.f32 %v1590, 1.0
          %v1608 = vadd.f32 %v1592, 1.0
          %v1609 = vrcp.pop %v1593
          %v1610 = vmul.f32 1.0, %v1609
          %v1611 = vrcp.pop %v1594
          %v1612 = vmul.f32 1.0, %v1611
          %v1613 = vrcp.pop %v1595
          %v1614 = vmul.f32 1.0, %v1613
          %v1615 = vrcp.pop %v1596
          %v1616 = vmul.f32 1.0, %v1615
          %v1617 = vrcp.pop %v1597
          %v1618 = vmul.f32 1.0, %v1617
          %v1619 = vrcp.pop %v1598
          %v1620 = vmul.f32 1.0, %v1619
          %v1621 = vrcp.pop %v1599
          %v1622 = vmul.f32 1.0, %v1621
          %v1623 = vrcp.pop %v1600
          %v1624 = vmul.f32 1.0, %v1623
          %v1625 = vrcp.pop %v1601
          %v1626 = vmul.f32 1.0, %v1625
          %v1627 = vrcp.pop %v1602
          %v1628 = vmul.f32 1.0, %v1627
          %v1629 = vrcp.pop %v1603
          %v1630 = vmul.f32 1.0, %v1629
          %v1631 = vrcp.pop %v1604
          %v1632 = vmul.f32 1.0, %v1631
          %v1633 = vrcp.pop %v1605
          %v1634 = vmul.f32 1.0, %v1633
          %v1635 = vrcp.pop %v1606
          %v1636 = vmul.f32 1.0, %v1635
          %v1637 = vrcp.pop %v1607
          %v1638 = vmul.f32 1.0, %v1637
          %v1639 = vrcp.pop %v1608
          %v1640 = vmul.f32 1.0, %v1639
          %v1641 = vtanh.pop %v1184
          %v1642 = vtanh.pop %v1185
          %v1643 = vtanh.pop %v1186
          %v1644 = vtanh.pop %v1187
          %v1645 = vtanh.pop %v1188
          %v1646 = vtanh.pop %v1189
          %v1647 = vtanh.pop %v1190
          %v1648 = vtanh.pop %v1191
          %v1649 = vtanh.pop %v1192
          %v1650 = vtanh.pop %v1193
          %v1651 = vtanh.pop %v1194
          %v1652 = vtanh.pop %v1195
          %v1653 = vtanh.pop %v1196
          %v1654 = vtanh.pop %v1197
          %v1655 = vtanh.pop %v1198
          %v1656 = vtanh.pop %v1199
          %v1657 = vmul.f32 %v1610, %v1641
          %v1658 = vmul.f32 %v1612, %v1642
          %v1659 = vmul.f32 %v1614, %v1643
          %v1660 = vmul.f32 %v1616, %v1644
          %v1661 = vmul.f32 %v1618, %v1645
          %v1662 = vmul.f32 %v1620, %v1646
          %v1663 = vmul.f32 %v1622, %v1647
          %v1664 = vmul.f32 %v1624, %v1648
          %v1665 = vmul.f32 %v1626, %v1649
          %v1666 = vmul.f32 %v1628, %v1650
          %v1667 = vmul.f32 %v1630, %v1651
          %v1668 = vmul.f32 %v1632, %v1652
          %v1669 = vmul.f32 %v1634, %v1653
          %v1670 = vmul.f32 %v1636, %v1654
          %v1671 = vmul.f32 %v1638, %v1655
          %v1672 = vmul.f32 %v1640, %v1656
          %v1673 = vsub.f32 1.0, %v1610
          %v1674 = vsub.f32 1.0, %v1612
          %v1675 = vsub.f32 1.0, %v1614
          %v1676 = vsub.f32 1.0, %v1616
          %v1677 = vsub.f32 1.0, %v1618
          %v1678 = vsub.f32 1.0, %v1620
          %v1679 = vsub.f32 1.0, %v1622
          %v1680 = vsub.f32 1.0, %v1624
          %v1681 = vsub.f32 1.0, %v1626
          %v1682 = vsub.f32 1.0, %v1628
          %v1683 = vsub.f32 1.0, %v1630
          %v1684 = vsub.f32 1.0, %v1632
          %v1685 = vsub.f32 1.0, %v1634
          %v1686 = vsub.f32 1.0, %v1636
          %v1687 = vsub.f32 1.0, %v1638
          %v1688 = vsub.f32 1.0, %v1640
          %v1689 = vmul.f32 %v1673, %v823
          %v1690 = vmul.f32 %v1674, %v824
          %v1691 = vmul.f32 %v1675, %v825
          %v1692 = vmul.f32 %v1676, %v826
          %v1693 = vmul.f32 %v1677, %v827
          %v1694 = vmul.f32 %v1678, %v828
          %v1695 = vmul.f32 %v1679, %v829
          %v1696 = vmul.f32 %v1680, %v830
          %v1697 = vmul.f32 %v1681, %v831
          %v1698 = vmul.f32 %v1682, %v832
          %v1699 = vmul.f32 %v1683, %v833
          %v1700 = vmul.f32 %v1684, %v834
          %v1701 = vmul.f32 %v1685, %v835
          %v1702 = vmul.f32 %v1686, %v836
          %v1703 = vmul.f32 %v1687, %v837
          %v1704 = vmul.f32 %v1688, %v838
          %v1705 = vadd.f32 %v1657, %v1689
          %v1706 = vadd.f32 %v1658, %v1690
          %v1707 = vadd.f32 %v1659, %v1691
          %v1708 = vadd.f32 %v1660, %v1692
          %v1709 = vadd.f32 %v1661, %v1693
          %v1710 = vadd.f32 %v1662, %v1694
          %v1711 = vadd.f32 %v1663, %v1695
          %v1712 = vadd.f32 %v1664, %v1696
          %v1713 = vadd.f32 %v1665, %v1697
          %v1714 = vadd.f32 %v1666, %v1698
          %v1715 = vadd.f32 %v1667, %v1699
          %v1716 = vadd.f32 %v1668, %v1700
          %v1717 = vadd.f32 %v1669, %v1701
          %v1718 = vadd.f32 %v1670, %v1702
          %v1719 = vadd.f32 %v1671, %v1703
          %v1720 = vadd.f32 %v1672, %v1704
          %v1721 = vmax.f32 %v1705, 0.0
          %v1722 = vmax.f32 %v1706, 0.0
          %v1723 = vmax.f32 %v1707, 0.0
          %v1724 = vmax.f32 %v1708, 0.0
          %v1725 = vmax.f32 %v1709, 0.0
          %v1726 = vmax.f32 %v1710, 0.0
          %v1727 = vmax.f32 %v1711, 0.0
          %v1728 = vmax.f32 %v1712, 0.0
          %v1729 = vmax.f32 %v1713, 0.0
          %v1730 = vmax.f32 %v1714, 0.0
          %v1731 = vmax.f32 %v1715, 0.0
          %v1732 = vmax.f32 %v1716, 0.0
          %v1733 = vmax.f32 %v1717, 0.0
          %v1734 = vmax.f32 %v1718, 0.0
          %v1735 = vmax.f32 %v1719, 0.0
          %v1736 = vmax.f32 %v1720, 0.0
          %1737 = vst [vmem:[%s521] sm:$0xff] %v1721
          %1738 = vst [vmem:[%s521 + $0x8] sm:$0xff] %v1722
          %1739 = vst [vmem:[%s521 + $0x10] sm:$0xff] %v1723
          %1740 = vst [vmem:[%s521 + $0x18] sm:$0xff] %v1724
          %1741 = vst [vmem:[%s521 + $0x20] sm:$0xff] %v1725
          %1742 = vst [vmem:[%s521 + $0x28] sm:$0xff] %v1726
          %1743 = vst [vmem:[%s521 + $0x30] sm:$0xff] %v1727
          %1744 = vst [vmem:[%s521 + $0x38] sm:$0xff] %v1728
          %1745 = vst [vmem:[%s521 + $0x40] sm:$0xff] %v1729
          %1746 = vst [vmem:[%s521 + $0x48] sm:$0xff] %v1730
          %1747 = vst [vmem:[%s521 + $0x50] sm:$0xff] %v1731
          %1748 = vst [vmem:[%s521 + $0x58] sm:$0xff] %v1732
          %1749 = vst [vmem:[%s521 + $0x60] sm:$0xff] %v1733
          %1750 = vst [vmem:[%s521 + $0x68] sm:$0xff] %v1734
          %1751 = vst [vmem:[%s521 + $0x70] sm:$0xff] %v1735
          %1752 = vst [vmem:[%s521 + $0x78] sm:$0xff] %v1736
        $region92: #{tpu_custom_call.1} parent=55 // pred_fallthru
          _
        %s1753 = sand.u32 %s272, 1
        %s1754 = scalar_lea.sflag [#allocation5], %s1753
        %s1755 = sand.u32 %s272, 1
        %s1756 = smul.addr %s1755, 128
        %s1757 = scalar_lea.vmem [#allocation15], %s1756
        // Predicated region
        $region93: #{tpu_custom_call.1} parent=55 // pred_check
          %p1758 = pneg %p282
        $region94: #{tpu_custom_call.1} parent=55 // pred_check_branch
          %1760 = sbr.rel (%p1758) target = $region96
        $region95: #{tpu_custom_call.1} parent=55 // pred_region
          %s1761 = smul.u32 16, %s37
          %s1763 = ssub.s32 2048, 2048
          %1764 = vsyncadd %s1754, %s1763
          %s1765 = smul.addr %s36, 16
          %s1766 = sadd.s32 %s1761, %s1765
          %s1767 = smul.addr %s1766, 128
          %s1768 = scalar_lea.hbm %s9, %s1767
          %s1769 = sshll.u32 %s1757, 4
          %s1770 = int_to_ptr.vmem [resolvable:$true] %s1769
          %1775 = dma.vmem_to_hbm [thread:$0]  %s1770, 2048, %s1768, %s1754, 128, 128, 8
        $region96: #{tpu_custom_call.1} parent=55 // pred_fallthru
          _
      $region56: #{tpu_custom_call.1} parent=5 // pred_fallthru
        _
      %p1776 = scmp.le.s32.totalorder 2, %s26
      // Predicated region
      $region97: #{tpu_custom_call.1} parent=5 // pred_check
        %p1777 = pneg %p1776
      $region98: #{tpu_custom_call.1} parent=5 // pred_check_branch
        %1779 = sbr.rel (%p1777) target = $region100
      $region99: #{tpu_custom_call.1} parent=5 // pred_region
        %s1780 = ssub.s32 %s26, 2
        // Predicated region
        $region101: #{tpu_custom_call.1} parent=99 // pred_check
          %p1781 = pneg %p288
        $region102: #{tpu_custom_call.1} parent=99 // pred_check_branch
          %1783 = sbr.rel (%p1781) target = $region104
        $region103: #{tpu_custom_call.1} parent=99 // pred_region
          %s1784 = sand.u32 %s273, 1
          %s1785 = scalar_lea.sflag [#allocation5], %s1784
          %s1786 = sand.u32 %s273, 1
          %s1787 = smul.addr %s1786, 128
          %s1788 = scalar_lea.vmem [#allocation15], %s1787
          %1789 = dma.done %s1785, 2048
        $region104: #{tpu_custom_call.1} parent=99 // pred_fallthru
          _
      $region100: #{tpu_custom_call.1} parent=5 // pred_fallthru
        _
    $region6: #{tpu_custom_call.1} parent=1 // loop_footer
      %s30 = sadd.s32 1, %s26
    $region7: #{tpu_custom_call.1} parent=1 // loop_footer_branch
      %25 = sbr.rel target = $region3
    $region8: #{tpu_custom_call.1} parent=1 // loop_exit
      _
    %1790 = vsyncpa [#allocation4], 1
    %s1791 = scalar_lea.sflag [#allocation4], 1
    %1792 = vsyncpa %s1791, 1
    %1793 = vsyncpa [#allocation7], 1
    %s1794 = scalar_lea.sflag [#allocation7], 1
    %1795 = vsyncpa %s1794, 1
    %1796 = vsyncpa [#allocation10], 1
    %1797 = vsyncpa [#allocation13], 1
    %1798 = vsyncpa [#allocation5], 1
    %s1799 = scalar_lea.sflag [#allocation5], 1
    %1800 = vsyncpa %s1799, 1

</llo_original>
